<compile_context>
chip_gen: v6e
topology: v6e:2x2x1
jax: 0.10.0
libtpu: 0.0.40
codegen_flags: <defaults>
</compile_context>

<pallas_src>
from functools import partial

import jax
import jax.numpy as jnp
from jax.experimental import pallas as pl
from jax.experimental.pallas import tpu as pltpu

BN_EPS = 1e-5


def resblock_kernel(x_ref, w1_ref, w2_ref, bn_ref, out_ref, *,
                    n, h, w, c_out, has_proj):
    """relu( shortcut(x) + bn2(conv2(relu(bn1(conv1(x))))) ), all lane-dense."""
    rows = n * h                 # sublane extent of every activation slab
    wc = w * c_out               # lane extent of the output slabs
    inv_m = 1.0 / float(n * h * w)

    # Per-image row index, used to mask the +-1 row shifts at image borders.
    row_in_img = jax.lax.broadcasted_iota(jnp.int32, (rows, 1), 0) % h

    def shift_down(p):           # out[r] = p[r-1]; zero at each image's row 0
        sh = jnp.concatenate([jnp.zeros_like(p[:1]), p[:-1]], axis=0)
        return jnp.where(row_in_img > 0, sh, 0.0)

    def shift_up(p):             # out[r] = p[r+1]; zero at each image's row h-1
        sh = jnp.concatenate([p[1:], jnp.zeros_like(p[:1])], axis=0)
        return jnp.where(row_in_img < h - 1, sh, 0.0)

    def conv3x3(a2, w_ref):
        # Three band matmuls: kw folded into the weight, kh = masked row shift.
        p0 = jnp.dot(a2, w_ref[0], preferred_element_type=jnp.float32)
        p1 = jnp.dot(a2, w_ref[1], preferred_element_type=jnp.float32)
        p2 = jnp.dot(a2, w_ref[2], preferred_element_type=jnp.float32)
        return p1 + shift_down(p0) + shift_up(p2)

    def fold_groups(v):
        # (1, W*Cout) -> per-channel sum across the W lane groups, result
        # already broadcast to every lane group.  log2(W) XLU roll+add steps;
        # direction-agnostic, needs W to be a power of two (wrapper asserts).
        shift = c_out
        while shift < wc:
            v = v + pltpu.roll(v, shift=shift, axis=1)
            shift *= 2
        return v

    def bn(x2, g_full, b_full, relu):
        # Training-mode BN, two-pass (centred) biased variance, lane-dense.
        mean = fold_groups(jnp.sum(x2, axis=0, keepdims=True)) * inv_m
        xc = x2 - mean
        var = fold_groups(jnp.sum(xc * xc, axis=0, keepdims=True)) * inv_m
        y = xc * (g_full * jax.lax.rsqrt(var + BN_EPS)) + b_full
        return jnp.maximum(y, 0.0) if relu else y

    x2 = x_ref[...]                                    # (rows, W*Cin)

    # ---- conv1 (+ fused 1x1 shortcut columns) -> bn1 -> relu ---------------
    acc1 = conv3x3(x2, w1_ref)                         # (rows, wc) or (rows, 2*wc)
    y1 = bn(acc1[:, :wc], bn_ref[0:1, :], bn_ref[1:2, :], relu=True)

    # ---- conv2 -> bn2 -------------------------------------------------------
    main = bn(conv3x3(y1, w2_ref), bn_ref[2:3, :], bn_ref[3:4, :], relu=False)

    # ---- shortcut -----------------------------------------------------------
    if has_proj:
        sc = bn(acc1[:, wc:], bn_ref[4:5, :], bn_ref[5:6, :], relu=False)
    else:
        sc = x2                                        # identity (c_in == c_out)

    out_ref[...] = jnp.maximum(main + sc, 0.0)         # full 128-lane store


# ------------------------------- wrapper -------------------------------------

def _band_weights(w_oihw, width):
    """OIHW (Cout,Cin,3,3) -> (3, width*Cin, width*Cout) block-tridiagonal bands."""
    hwio = jnp.transpose(w_oihw, (2, 3, 1, 0)).astype(jnp.float32)  # (3,3,Cin,Cout)
    bands = []
    for kh in range(3):
        b = sum(jnp.kron(jnp.eye(width, k=1 - kw, dtype=jnp.float32), hwio[kh, kw])
                for kw in range(3))
        bands.append(b)
    return jnp.stack(bands)


def resblock_forward(x_nchw, p, stride=1):
    """ResBlock forward; input / output NCHW to match PyTorch."""
    assert stride == 1, "TODO(synk): stride > 1 not implemented"
    n, c_in, h, w = x_nchw.shape
    c_out = p["w1"].shape[0]
    has_proj = c_in != c_out
    assert w & (w - 1) == 0, "lane-group fold assumes W is a power of two"

    # Lane-dense activation (N*H, W*Cin), channel fastest within each W group.
    x_ld = (jnp.transpose(x_nchw, (0, 2, 3, 1))
            .reshape(n * h, w * c_in).astype(jnp.float32))

    w1 = _band_weights(p["w1"], w)                      # (3, W*Cin, W*Cout)
    w2 = _band_weights(p["w2"], w)                      # (3, W*Cout, W*Cout)
    if has_proj:
        wsc = jnp.transpose(p["wsc"], (2, 3, 1, 0))[0, 0].astype(jnp.float32)
        sc_band = jnp.kron(jnp.eye(w, dtype=jnp.float32), wsc)   # (W*Cin, W*Cout)
        zeros = jnp.zeros_like(sc_band)
        # Fuse the 1x1 shortcut as extra output columns of the centre-row band.
        w1 = jnp.stack([jnp.concatenate([w1[0], zeros], axis=1),
                        jnp.concatenate([w1[1], sc_band], axis=1),
                        jnp.concatenate([w1[2], zeros], axis=1)])  # (3, W*Cin, 2*W*Cout)

    # Six per-channel BN vectors, each pre-tiled to lane width W*Cout, one input.
    tile = lambda v: jnp.tile(v.astype(jnp.float32).reshape(1, c_out), (1, w))
    bn_packed = jnp.concatenate(
        [tile(p["g1"]), tile(p["be1"]), tile(p["g2"]), tile(p["be2"]),
         tile(p["gsc"]), tile(p["besc"])], axis=0)      # (6, W*Cout)

    vmem = pl.BlockSpec(memory_space=pltpu.MemorySpace.VMEM)
    out_ld = pl.pallas_call(
        partial(resblock_kernel, n=n, h=h, w=w, c_out=c_out, has_proj=has_proj),
        out_shape=jax.ShapeDtypeStruct((n * h, w * c_out), jnp.float32),
        in_specs=[vmem] * 4,
        out_specs=vmem,
    )(x_ld, w1, w2, bn_packed)

    out = out_ld.reshape(n, h, w, c_out)
    return jnp.transpose(out, (0, 3, 1, 2))             # back to NCHW


# ----------------------------- reference & setup -----------------------------

def init_params(key, ch_in, ch_out):
    ks = jax.random.split(key, 12)
    rnd = lambda k, shape, s=0.1: s * jax.random.normal(k, shape, jnp.float32)
    return dict(
        w1=rnd(ks[0], (ch_out, ch_in, 3, 3)), b1=rnd(ks[1], (ch_out,)),
        g1=1.0 + rnd(ks[2], (ch_out,)),       be1=rnd(ks[3], (ch_out,)),
        w2=rnd(ks[4], (ch_out, ch_out, 3, 3)), b2=rnd(ks[5], (ch_out,)),
        g2=1.0 + rnd(ks[6], (ch_out,)),       be2=rnd(ks[7], (ch_out,)),
        wsc=rnd(ks[8], (ch_out, ch_in, 1, 1)), bsc=rnd(ks[9], (ch_out,)),
        gsc=1.0 + rnd(ks[10], (ch_out,)),     besc=rnd(ks[11], (ch_out,)),
    )


def ref_forward(x, p):
    """Pure-JAX (XLA) reference of the PyTorch ResBlock forward, NCHW.

    Conv biases ARE applied here (as in nn.Conv2d); the kernel omits them
    because training-mode BN's mean subtraction cancels them exactly.
    """
    def conv(x, w, b, padding):
        out = jax.lax.conv_general_dilated(
            x, w, (1, 1), [(padding, padding)] * 2,
            dimension_numbers=("NCHW", "OIHW", "NCHW"))
        return out + b[None, :, None, None]

    def bn(x, g, be):
        mean = x.mean(axis=(0, 2, 3), keepdims=True)
        var = ((x - mean) ** 2).mean(axis=(0, 2, 3), keepdims=True)
        xn = (x - mean) / jnp.sqrt(var + BN_EPS)
        return xn * g[None, :, None, None] + be[None, :, None, None]

    out = jax.nn.relu(bn(conv(x, p["w1"], p["b1"], 1), p["g1"], p["be1"]))
    out = bn(conv(out, p["w2"], p["b2"], 1), p["g2"], p["be2"])
    if x.shape[1] != p["w1"].shape[0]:                  # projection shortcut
        sc = bn(conv(x, p["wsc"], p["bsc"], 0), p["gsc"], p["besc"])
    else:                                               # identity shortcut
        sc = x
    return jax.nn.relu(sc + out)


if __name__ == "__main__":
    key = jax.random.PRNGKey(0)
    kx, kp = jax.random.split(key)

    N, Cin, H, W = 2, 4, 16, 16
    Cout = 8                     # ch_out != ch_in -> projection shortcut path

    x = jax.random.normal(kx, (N, Cin, H, W), jnp.float32)
    params = init_params(kp, Cin, Cout)

    out = jax.block_until_ready(resblock_forward(x, params))
    assert out.shape == (N, Cout, H, W), out.shape

    ref = ref_forward(x, params)
    err = float(jnp.max(jnp.abs(out - ref)))
    assert jnp.allclose(out, ref, rtol=1e-4, atol=1e-4), f"max abs err {err}"

    print("KERNEL_OK")
</pallas_src>

<mosaic_0001>
module attributes {stable_mosaic.version = 11 : i64} {
  func.func @resblock_kernel(%arg0: memref<32x64xf32, #tpu.memory_space<vmem>>, %arg1: memref<3x64x256xf32, #tpu.memory_space<vmem>>, %arg2: memref<3x128x128xf32, #tpu.memory_space<vmem>>, %arg3: memref<6x128xf32, #tpu.memory_space<vmem>>, %arg4: memref<32x128xf32, #tpu.memory_space<vmem>>) attributes {dimension_semantics = [], scalar_prefetch = 0 : i64, scratch_operands = 0 : i64, tpu.core_type = #tpu.core_type<tc>} {
    %0 = tpu.iota {dimensions = array<i32: 0>} : vector<32x1xi32>
    %c16_i32 = arith.constant 16 : i32
    %c0_i32 = arith.constant 0 : i32
    %1 = arith.cmpi eq, %c16_i32, %c0_i32 : i32
    %c1_i32 = arith.constant 1 : i32
    %2 = arith.select %1, %c1_i32, %c16_i32 : i32
    %3 = vector.broadcast %2 : i32 to vector<32x1xi32>
    %4 = arith.remsi %0, %3 : vector<32x1xi32>
    %c0_i32_0 = arith.constant 0 : i32
    %5 = vector.broadcast %c0_i32_0 : i32 to vector<32x1xi32>
    %6 = arith.cmpi ne, %4, %5 : vector<32x1xi32>
    %c0_i32_1 = arith.constant 0 : i32
    %7 = vector.broadcast %c0_i32_1 : i32 to vector<32x1xi32>
    %8 = arith.cmpi slt, %4, %7 : vector<32x1xi32>
    %c0_i32_2 = arith.constant 0 : i32
    %9 = arith.cmpi slt, %2, %c0_i32_2 : i32
    %10 = vector.broadcast %9 : i1 to vector<32x1xi1>
    %11 = vector.broadcast %10 : vector<32x1xi1> to vector<32x1xi1>
    %12 = arith.xori %8, %11 : vector<32x1xi1>
    %13 = arith.andi %12, %6 : vector<32x1xi1>
    %14 = vector.broadcast %2 : i32 to vector<32x1xi32>
    %15 = arith.addi %4, %14 : vector<32x1xi32>
    %16 = arith.select %13, %15, %4 : vector<32x1xi1>, vector<32x1xi32>
    %c0 = arith.constant 0 : index
    %c0_3 = arith.constant 0 : index
    %17 = vector.load %arg0[%c0, %c0_3] : memref<32x64xf32, #tpu.memory_space<vmem>>, vector<32x64xf32>
    %c0_4 = arith.constant 0 : index
    %c0_5 = arith.constant 0 : index
    %c0_6 = arith.constant 0 : index
    %18 = vector.load %arg1[%c0_4, %c0_5, %c0_6] : memref<3x64x256xf32, #tpu.memory_space<vmem>>, vector<1x64x256xf32>
    %19 = vector.shape_cast %18 : vector<1x64x256xf32> to vector<64x256xf32>
    %cst = arith.constant dense<0.000000e+00> : vector<32x256xf32>
    %20 = tpu.matmul %17, %19, %cst {dimension_numbers = #tpu.dot_dimension_numbers<[1], [0], [0], [1], [0, 0, 1, 1], [], []>} : vector<32x64xf32>, vector<64x256xf32>, vector<32x256xf32> -> vector<32x256xf32>
    %c1 = arith.constant 1 : index
    %c0_7 = arith.constant 0 : index
    %c0_8 = arith.constant 0 : index
    %21 = vector.load %arg1[%c1, %c0_7, %c0_8] : memref<3x64x256xf32, #tpu.memory_space<vmem>>, vector<1x64x256xf32>
    %22 = vector.shape_cast %21 : vector<1x64x256xf32> to vector<64x256xf32>
    %cst_9 = arith.constant dense<0.000000e+00> : vector<32x256xf32>
    %23 = tpu.matmul %17, %22, %cst_9 {dimension_numbers = #tpu.dot_dimension_numbers<[1], [0], [0], [1], [0, 0, 1, 1], [], []>} : vector<32x64xf32>, vector<64x256xf32>, vector<32x256xf32> -> vector<32x256xf32>
    %c2 = arith.constant 2 : index
    %c0_10 = arith.constant 0 : index
    %c0_11 = arith.constant 0 : index
    %24 = vector.load %arg1[%c2, %c0_10, %c0_11] : memref<3x64x256xf32, #tpu.memory_space<vmem>>, vector<1x64x256xf32>
    %25 = vector.shape_cast %24 : vector<1x64x256xf32> to vector<64x256xf32>
    %cst_12 = arith.constant dense<0.000000e+00> : vector<32x256xf32>
    %26 = tpu.matmul %17, %25, %cst_12 {dimension_numbers = #tpu.dot_dimension_numbers<[1], [0], [0], [1], [0, 0, 1, 1], [], []>} : vector<32x64xf32>, vector<64x256xf32>, vector<32x256xf32> -> vector<32x256xf32>
    %cst_13 = arith.constant 0.000000e+00 : f32
    %27 = vector.broadcast %cst_13 : f32 to vector<1x256xf32>
    %28 = vector.extract_strided_slice %20 {offsets = [0, 0], sizes = [31, 256], strides = [1, 1]} : vector<32x256xf32> to vector<31x256xf32>
    %29 = tpu.concatenate %27, %28 in 0 : vector<1x256xf32>, vector<31x256xf32> -> vector<32x256xf32>
    %c0_i32_14 = arith.constant 0 : i32
    %30 = vector.broadcast %c0_i32_14 : i32 to vector<32x1xi32>
    %31 = arith.cmpi sgt, %16, %30 : vector<32x1xi32>
    %cst_15 = arith.constant 0.000000e+00 : f32
    %32 = vector.shape_cast %31 : vector<32x1xi1> to vector<32x1xi1>
    %33 = vector.broadcast %32 : vector<32x1xi1> to vector<32x256xi1>
    %34 = vector.broadcast %cst_15 : f32 to vector<32x256xf32>
    %35 = arith.select %33, %29, %34 : vector<32x256xi1>, vector<32x256xf32>
    %36 = arith.addf %23, %35 : vector<32x256xf32>
    %37 = vector.extract_strided_slice %26 {offsets = [1, 0], sizes = [31, 256], strides = [1, 1]} : vector<32x256xf32> to vector<31x256xf32>
    %cst_16 = arith.constant 0.000000e+00 : f32
    %38 = vector.broadcast %cst_16 : f32 to vector<1x256xf32>
    %39 = tpu.concatenate %37, %38 in 0 : vector<31x256xf32>, vector<1x256xf32> -> vector<32x256xf32>
    %c15_i32 = arith.constant 15 : i32
    %40 = vector.broadcast %c15_i32 : i32 to vector<32x1xi32>
    %41 = arith.cmpi slt, %16, %40 : vector<32x1xi32>
    %cst_17 = arith.constant 0.000000e+00 : f32
    %42 = vector.shape_cast %41 : vector<32x1xi1> to vector<32x1xi1>
    %43 = vector.broadcast %42 : vector<32x1xi1> to vector<32x256xi1>
    %44 = vector.broadcast %cst_17 : f32 to vector<32x256xf32>
    %45 = arith.select %43, %39, %44 : vector<32x256xi1>, vector<32x256xf32>
    %46 = arith.addf %36, %45 : vector<32x256xf32>
    %47 = vector.extract_strided_slice %46 {offsets = [0, 0], sizes = [32, 128], strides = [1, 1]} : vector<32x256xf32> to vector<32x128xf32>
    %c0_18 = arith.constant 0 : index
    %c0_19 = arith.constant 0 : index
    %48 = vector.load %arg3[%c0_18, %c0_19] : memref<6x128xf32, #tpu.memory_space<vmem>>, vector<1x128xf32>
    %c1_20 = arith.constant 1 : index
    %c0_21 = arith.constant 0 : index
    %49 = vector.load %arg3[%c1_20, %c0_21] : memref<6x128xf32, #tpu.memory_space<vmem>>, vector<1x128xf32>
    %cst_22 = arith.constant dense<0.000000e+00> : vector<128xf32>
    %50 = vector.multi_reduction <add>, %47, %cst_22 [0] : vector<32x128xf32> to vector<128xf32>
    %51 = vector.shape_cast %50 : vector<128xf32> to vector<1x128xf32>
    %c8_i32 = arith.constant 8 : i32
    %52 = tpu.dynamic_rotate %51 by %c8_i32 dim 1 : vector<1x128xf32>, i32 -> vector<1x128xf32>
    %53 = arith.addf %51, %52 : vector<1x128xf32>
    %c16_i32_23 = arith.constant 16 : i32
    %54 = tpu.dynamic_rotate %53 by %c16_i32_23 dim 1 : vector<1x128xf32>, i32 -> vector<1x128xf32>
    %55 = arith.addf %53, %54 : vector<1x128xf32>
    %c32_i32 = arith.constant 32 : i32
    %56 = tpu.dynamic_rotate %55 by %c32_i32 dim 1 : vector<1x128xf32>, i32 -> vector<1x128xf32>
    %57 = arith.addf %55, %56 : vector<1x128xf32>
    %c64_i32 = arith.constant 64 : i32
    %58 = tpu.dynamic_rotate %57 by %c64_i32 dim 1 : vector<1x128xf32>, i32 -> vector<1x128xf32>
    %59 = arith.addf %57, %58 : vector<1x128xf32>
    %cst_24 = arith.constant 0.001953125 : f32
    %60 = vector.broadcast %cst_24 : f32 to vector<1x128xf32>
    %61 = arith.mulf %59, %60 : vector<1x128xf32>
    %62 = vector.broadcast %61 : vector<1x128xf32> to vector<32x128xf32>
    %63 = arith.subf %47, %62 : vector<32x128xf32>
    %64 = arith.mulf %63, %63 : vector<32x128xf32>
    %cst_25 = arith.constant dense<0.000000e+00> : vector<128xf32>
    %65 = vector.multi_reduction <add>, %64, %cst_25 [0] : vector<32x128xf32> to vector<128xf32>
    %66 = vector.shape_cast %65 : vector<128xf32> to vector<1x128xf32>
    %c8_i32_26 = arith.constant 8 : i32
    %67 = tpu.dynamic_rotate %66 by %c8_i32_26 dim 1 : vector<1x128xf32>, i32 -> vector<1x128xf32>
    %68 = arith.addf %66, %67 : vector<1x128xf32>
    %c16_i32_27 = arith.constant 16 : i32
    %69 = tpu.dynamic_rotate %68 by %c16_i32_27 dim 1 : vector<1x128xf32>, i32 -> vector<1x128xf32>
    %70 = arith.addf %68, %69 : vector<1x128xf32>
    %c32_i32_28 = arith.constant 32 : i32
    %71 = tpu.dynamic_rotate %70 by %c32_i32_28 dim 1 : vector<1x128xf32>, i32 -> vector<1x128xf32>
    %72 = arith.addf %70, %71 : vector<1x128xf32>
    %c64_i32_29 = arith.constant 64 : i32
    %73 = tpu.dynamic_rotate %72 by %c64_i32_29 dim 1 : vector<1x128xf32>, i32 -> vector<1x128xf32>
    %74 = arith.addf %72, %73 : vector<1x128xf32>
    %cst_30 = arith.constant 0.001953125 : f32
    %75 = vector.broadcast %cst_30 : f32 to vector<1x128xf32>
    %76 = arith.mulf %74, %75 : vector<1x128xf32>
    %cst_31 = arith.constant 9.99999974E-6 : f32
    %77 = vector.broadcast %cst_31 : f32 to vector<1x128xf32>
    %78 = arith.addf %76, %77 : vector<1x128xf32>
    %79 = math.rsqrt %78 : vector<1x128xf32>
    %80 = arith.mulf %48, %79 : vector<1x128xf32>
    %81 = vector.broadcast %80 : vector<1x128xf32> to vector<32x128xf32>
    %82 = arith.mulf %63, %81 : vector<32x128xf32>
    %83 = vector.broadcast %49 : vector<1x128xf32> to vector<32x128xf32>
    %84 = arith.addf %82, %83 : vector<32x128xf32>
    %cst_32 = arith.constant 0.000000e+00 : f32
    %85 = vector.broadcast %cst_32 : f32 to vector<32x128xf32>
    %86 = arith.maximumf %84, %85 : vector<32x128xf32>
    %c0_33 = arith.constant 0 : index
    %c0_34 = arith.constant 0 : index
    %c0_35 = arith.constant 0 : index
    %87 = vector.load %arg2[%c0_33, %c0_34, %c0_35] : memref<3x128x128xf32, #tpu.memory_space<vmem>>, vector<1x128x128xf32>
    %88 = vector.shape_cast %87 : vector<1x128x128xf32> to vector<128x128xf32>
    %cst_36 = arith.constant dense<0.000000e+00> : vector<32x128xf32>
    %89 = tpu.matmul %86, %88, %cst_36 {dimension_numbers = #tpu.dot_dimension_numbers<[1], [0], [0], [1], [0, 0, 1, 1], [], []>} : vector<32x128xf32>, vector<128x128xf32>, vector<32x128xf32> -> vector<32x128xf32>
    %c1_37 = arith.constant 1 : index
    %c0_38 = arith.constant 0 : index
    %c0_39 = arith.constant 0 : index
    %90 = vector.load %arg2[%c1_37, %c0_38, %c0_39] : memref<3x128x128xf32, #tpu.memory_space<vmem>>, vector<1x128x128xf32>
    %91 = vector.shape_cast %90 : vector<1x128x128xf32> to vector<128x128xf32>
    %cst_40 = arith.constant dense<0.000000e+00> : vector<32x128xf32>
    %92 = tpu.matmul %86, %91, %cst_40 {dimension_numbers = #tpu.dot_dimension_numbers<[1], [0], [0], [1], [0, 0, 1, 1], [], []>} : vector<32x128xf32>, vector<128x128xf32>, vector<32x128xf32> -> vector<32x128xf32>
    %c2_41 = arith.constant 2 : index
    %c0_42 = arith.constant 0 : index
    %c0_43 = arith.constant 0 : index
    %93 = vector.load %arg2[%c2_41, %c0_42, %c0_43] : memref<3x128x128xf32, #tpu.memory_space<vmem>>, vector<1x128x128xf32>
    %94 = vector.shape_cast %93 : vector<1x128x128xf32> to vector<128x128xf32>
    %cst_44 = arith.constant dense<0.000000e+00> : vector<32x128xf32>
    %95 = tpu.matmul %86, %94, %cst_44 {dimension_numbers = #tpu.dot_dimension_numbers<[1], [0], [0], [1], [0, 0, 1, 1], [], []>} : vector<32x128xf32>, vector<128x128xf32>, vector<32x128xf32> -> vector<32x128xf32>
    %cst_45 = arith.constant 0.000000e+00 : f32
    %96 = vector.broadcast %cst_45 : f32 to vector<1x128xf32>
    %97 = vector.extract_strided_slice %89 {offsets = [0, 0], sizes = [31, 128], strides = [1, 1]} : vector<32x128xf32> to vector<31x128xf32>
    %98 = tpu.concatenate %96, %97 in 0 : vector<1x128xf32>, vector<31x128xf32> -> vector<32x128xf32>
    %c0_i32_46 = arith.constant 0 : i32
    %99 = vector.broadcast %c0_i32_46 : i32 to vector<32x1xi32>
    %100 = arith.cmpi sgt, %16, %99 : vector<32x1xi32>
    %cst_47 = arith.constant 0.000000e+00 : f32
    %101 = vector.shape_cast %100 : vector<32x1xi1> to vector<32x1xi1>
    %102 = vector.broadcast %101 : vector<32x1xi1> to vector<32x128xi1>
    %103 = vector.broadcast %cst_47 : f32 to vector<32x128xf32>
    %104 = arith.select %102, %98, %103 : vector<32x128xi1>, vector<32x128xf32>
    %105 = arith.addf %92, %104 : vector<32x128xf32>
    %106 = vector.extract_strided_slice %95 {offsets = [1, 0], sizes = [31, 128], strides = [1, 1]} : vector<32x128xf32> to vector<31x128xf32>
    %cst_48 = arith.constant 0.000000e+00 : f32
    %107 = vector.broadcast %cst_48 : f32 to vector<1x128xf32>
    %108 = tpu.concatenate %106, %107 in 0 : vector<31x128xf32>, vector<1x128xf32> -> vector<32x128xf32>
    %c15_i32_49 = arith.constant 15 : i32
    %109 = vector.broadcast %c15_i32_49 : i32 to vector<32x1xi32>
    %110 = arith.cmpi slt, %16, %109 : vector<32x1xi32>
    %cst_50 = arith.constant 0.000000e+00 : f32
    %111 = vector.shape_cast %110 : vector<32x1xi1> to vector<32x1xi1>
    %112 = vector.broadcast %111 : vector<32x1xi1> to vector<32x128xi1>
    %113 = vector.broadcast %cst_50 : f32 to vector<32x128xf32>
    %114 = arith.select %112, %108, %113 : vector<32x128xi1>, vector<32x128xf32>
    %115 = arith.addf %105, %114 : vector<32x128xf32>
    %c2_51 = arith.constant 2 : index
    %c0_52 = arith.constant 0 : index
    %116 = vector.load %arg3[%c2_51, %c0_52] : memref<6x128xf32, #tpu.memory_space<vmem>>, vector<1x128xf32>
    %c3 = arith.constant 3 : index
    %c0_53 = arith.constant 0 : index
    %117 = vector.load %arg3[%c3, %c0_53] : memref<6x128xf32, #tpu.memory_space<vmem>>, vector<1x128xf32>
    %cst_54 = arith.constant dense<0.000000e+00> : vector<128xf32>
    %118 = vector.multi_reduction <add>, %115, %cst_54 [0] : vector<32x128xf32> to vector<128xf32>
    %119 = vector.shape_cast %118 : vector<128xf32> to vector<1x128xf32>
    %c8_i32_55 = arith.constant 8 : i32
    %120 = tpu.dynamic_rotate %119 by %c8_i32_55 dim 1 : vector<1x128xf32>, i32 -> vector<1x128xf32>
    %121 = arith.addf %119, %120 : vector<1x128xf32>
    %c16_i32_56 = arith.constant 16 : i32
    %122 = tpu.dynamic_rotate %121 by %c16_i32_56 dim 1 : vector<1x128xf32>, i32 -> vector<1x128xf32>
    %123 = arith.addf %121, %122 : vector<1x128xf32>
    %c32_i32_57 = arith.constant 32 : i32
    %124 = tpu.dynamic_rotate %123 by %c32_i32_57 dim 1 : vector<1x128xf32>, i32 -> vector<1x128xf32>
    %125 = arith.addf %123, %124 : vector<1x128xf32>
    %c64_i32_58 = arith.constant 64 : i32
    %126 = tpu.dynamic_rotate %125 by %c64_i32_58 dim 1 : vector<1x128xf32>, i32 -> vector<1x128xf32>
    %127 = arith.addf %125, %126 : vector<1x128xf32>
    %cst_59 = arith.constant 0.001953125 : f32
    %128 = vector.broadcast %cst_59 : f32 to vector<1x128xf32>
    %129 = arith.mulf %127, %128 : vector<1x128xf32>
    %130 = vector.broadcast %129 : vector<1x128xf32> to vector<32x128xf32>
    %131 = arith.subf %115, %130 : vector<32x128xf32>
    %132 = arith.mulf %131, %131 : vector<32x128xf32>
    %cst_60 = arith.constant dense<0.000000e+00> : vector<128xf32>
    %133 = vector.multi_reduction <add>, %132, %cst_60 [0] : vector<32x128xf32> to vector<128xf32>
    %134 = vector.shape_cast %133 : vector<128xf32> to vector<1x128xf32>
    %c8_i32_61 = arith.constant 8 : i32
    %135 = tpu.dynamic_rotate %134 by %c8_i32_61 dim 1 : vector<1x128xf32>, i32 -> vector<1x128xf32>
    %136 = arith.addf %134, %135 : vector<1x128xf32>
    %c16_i32_62 = arith.constant 16 : i32
    %137 = tpu.dynamic_rotate %136 by %c16_i32_62 dim 1 : vector<1x128xf32>, i32 -> vector<1x128xf32>
    %138 = arith.addf %136, %137 : vector<1x128xf32>
    %c32_i32_63 = arith.constant 32 : i32
    %139 = tpu.dynamic_rotate %138 by %c32_i32_63 dim 1 : vector<1x128xf32>, i32 -> vector<1x128xf32>
    %140 = arith.addf %138, %139 : vector<1x128xf32>
    %c64_i32_64 = arith.constant 64 : i32
    %141 = tpu.dynamic_rotate %140 by %c64_i32_64 dim 1 : vector<1x128xf32>, i32 -> vector<1x128xf32>
    %142 = arith.addf %140, %141 : vector<1x128xf32>
    %cst_65 = arith.constant 0.001953125 : f32
    %143 = vector.broadcast %cst_65 : f32 to vector<1x128xf32>
    %144 = arith.mulf %142, %143 : vector<1x128xf32>
    %cst_66 = arith.constant 9.99999974E-6 : f32
    %145 = vector.broadcast %cst_66 : f32 to vector<1x128xf32>
    %146 = arith.addf %144, %145 : vector<1x128xf32>
    %147 = math.rsqrt %146 : vector<1x128xf32>
    %148 = arith.mulf %116, %147 : vector<1x128xf32>
    %149 = vector.broadcast %148 : vector<1x128xf32> to vector<32x128xf32>
    %150 = arith.mulf %131, %149 : vector<32x128xf32>
    %151 = vector.broadcast %117 : vector<1x128xf32> to vector<32x128xf32>
    %152 = arith.addf %150, %151 : vector<32x128xf32>
    %153 = vector.extract_strided_slice %46 {offsets = [0, 128], sizes = [32, 128], strides = [1, 1]} : vector<32x256xf32> to vector<32x128xf32>
    %c4 = arith.constant 4 : index
    %c0_67 = arith.constant 0 : index
    %154 = vector.load %arg3[%c4, %c0_67] : memref<6x128xf32, #tpu.memory_space<vmem>>, vector<1x128xf32>
    %c5 = arith.constant 5 : index
    %c0_68 = arith.constant 0 : index
    %155 = vector.load %arg3[%c5, %c0_68] : memref<6x128xf32, #tpu.memory_space<vmem>>, vector<1x128xf32>
    %cst_69 = arith.constant dense<0.000000e+00> : vector<128xf32>
    %156 = vector.multi_reduction <add>, %153, %cst_69 [0] : vector<32x128xf32> to vector<128xf32>
    %157 = vector.shape_cast %156 : vector<128xf32> to vector<1x128xf32>
    %c8_i32_70 = arith.constant 8 : i32
    %158 = tpu.dynamic_rotate %157 by %c8_i32_70 dim 1 : vector<1x128xf32>, i32 -> vector<1x128xf32>
    %159 = arith.addf %157, %158 : vector<1x128xf32>
    %c16_i32_71 = arith.constant 16 : i32
    %160 = tpu.dynamic_rotate %159 by %c16_i32_71 dim 1 : vector<1x128xf32>, i32 -> vector<1x128xf32>
    %161 = arith.addf %159, %160 : vector<1x128xf32>
    %c32_i32_72 = arith.constant 32 : i32
    %162 = tpu.dynamic_rotate %161 by %c32_i32_72 dim 1 : vector<1x128xf32>, i32 -> vector<1x128xf32>
    %163 = arith.addf %161, %162 : vector<1x128xf32>
    %c64_i32_73 = arith.constant 64 : i32
    %164 = tpu.dynamic_rotate %163 by %c64_i32_73 dim 1 : vector<1x128xf32>, i32 -> vector<1x128xf32>
    %165 = arith.addf %163, %164 : vector<1x128xf32>
    %cst_74 = arith.constant 0.001953125 : f32
    %166 = vector.broadcast %cst_74 : f32 to vector<1x128xf32>
    %167 = arith.mulf %165, %166 : vector<1x128xf32>
    %168 = vector.broadcast %167 : vector<1x128xf32> to vector<32x128xf32>
    %169 = arith.subf %153, %168 : vector<32x128xf32>
    %170 = arith.mulf %169, %169 : vector<32x128xf32>
    %cst_75 = arith.constant dense<0.000000e+00> : vector<128xf32>
    %171 = vector.multi_reduction <add>, %170, %cst_75 [0] : vector<32x128xf32> to vector<128xf32>
    %172 = vector.shape_cast %171 : vector<128xf32> to vector<1x128xf32>
    %c8_i32_76 = arith.constant 8 : i32
    %173 = tpu.dynamic_rotate %172 by %c8_i32_76 dim 1 : vector<1x128xf32>, i32 -> vector<1x128xf32>
    %174 = arith.addf %172, %173 : vector<1x128xf32>
    %c16_i32_77 = arith.constant 16 : i32
    %175 = tpu.dynamic_rotate %174 by %c16_i32_77 dim 1 : vector<1x128xf32>, i32 -> vector<1x128xf32>
    %176 = arith.addf %174, %175 : vector<1x128xf32>
    %c32_i32_78 = arith.constant 32 : i32
    %177 = tpu.dynamic_rotate %176 by %c32_i32_78 dim 1 : vector<1x128xf32>, i32 -> vector<1x128xf32>
    %178 = arith.addf %176, %177 : vector<1x128xf32>
    %c64_i32_79 = arith.constant 64 : i32
    %179 = tpu.dynamic_rotate %178 by %c64_i32_79 dim 1 : vector<1x128xf32>, i32 -> vector<1x128xf32>
    %180 = arith.addf %178, %179 : vector<1x128xf32>
    %cst_80 = arith.constant 0.001953125 : f32
    %181 = vector.broadcast %cst_80 : f32 to vector<1x128xf32>
    %182 = arith.mulf %180, %181 : vector<1x128xf32>
    %cst_81 = arith.constant 9.99999974E-6 : f32
    %183 = vector.broadcast %cst_81 : f32 to vector<1x128xf32>
    %184 = arith.addf %182, %183 : vector<1x128xf32>
    %185 = math.rsqrt %184 : vector<1x128xf32>
    %186 = arith.mulf %154, %185 : vector<1x128xf32>
    %187 = vector.broadcast %186 : vector<1x128xf32> to vector<32x128xf32>
    %188 = arith.mulf %169, %187 : vector<32x128xf32>
    %189 = vector.broadcast %155 : vector<1x128xf32> to vector<32x128xf32>
    %190 = arith.addf %188, %189 : vector<32x128xf32>
    %191 = arith.addf %152, %190 : vector<32x128xf32>
    %cst_82 = arith.constant 0.000000e+00 : f32
    %192 = vector.broadcast %cst_82 : f32 to vector<32x128xf32>
    %193 = arith.maximumf %191, %192 : vector<32x128xf32>
    %c0_83 = arith.constant 0 : index
    %c0_84 = arith.constant 0 : index
    %194 = vector.load %arg4[%c0_83, %c0_84] : memref<32x128xf32, #tpu.memory_space<vmem>>, vector<32x128xf32>
    tpu.vector_store %arg4[%c0_83, %c0_84], %193 {strides = array<i32>} : memref<32x128xf32, #tpu.memory_space<vmem>>, vector<32x128xf32>,
    return
  }
}

</mosaic_0001>

<llo_original>
// kernel: tpu_custom_call.1
$region0: #{tpu_custom_call.1}
  #allocation0 [shape = 'u32[]', space=smem, size = 0x4, offset = 0x4, fixed_abs, tag = 'smem constant byte address 0x4 - core index']
  #allocation1 [shape = 'u32[144,128]{1,0:T(1,128)}', space=vmem, size = 0x12000, scoped, tag = 'internal scratch']
  %s0 = inlined_call_operand.hbm [shape: f32[32,64], index: 0, kind: input, shape index: {}]
  %s1 = inlined_call_operand.hbm [shape: f32[3,64,256], index: 1, kind: input, shape index: {}]
  %s2 = inlined_call_operand.hbm [shape: f32[3,128,128], index: 2, kind: input, shape index: {}]
  %s3 = inlined_call_operand.hbm [shape: f32[6,128], index: 3, kind: input, shape index: {}]
  %s4 = inlined_call_operand.hbm [shape: f32[32,128], index: 4, kind: output, shape index: {}]
  %s5 = sld [smem:[#allocation0]]
  $region42: #{tpu_custom_call.1} parent=0
    _
  %s7 = ssub.s32 1, %s5
  %s8 = scalar_select 0, %s7, %s5
  $region1: #{tpu_custom_call.1} parent=0
    #allocation2 [shape = 'u8[16384]{0}', space=vmem, size = 0x4000, scoped, tag = 'input window, operand 0, single buffered']
    #allocation3 [shape = 's32[1]{0}', space=sflag, size = 0x4, scoped, tag = 'scoped memory for tpu_custom_call.1']
    #allocation4 [shape = 's32[1]{0}', space=sflag, size = 0x4, scoped, tag = 'scoped memory for tpu_custom_call.1']
    #allocation5 [shape = 'u8[196608]{0}', space=vmem, size = 0x30000, scoped, tag = 'input window, operand 1, single buffered']
    #allocation6 [shape = 's32[1]{0}', space=sflag, size = 0x4, scoped, tag = 'scoped memory for tpu_custom_call.1']
    #allocation7 [shape = 'u8[196608]{0}', space=vmem, size = 0x30000, scoped, tag = 'input window, operand 2, single buffered']
    #allocation8 [shape = 'u8[4096]{0}', space=vmem, size = 0x1000, scoped, tag = 'input window, operand 3, single buffered']
    #allocation9 [shape = 's32[1]{0}', space=sflag, size = 0x4, scoped, tag = 'scoped memory for tpu_custom_call.1']
    #allocation10 [shape = 'u8[16384]{0}', space=vmem, size = 0x4000, scoped, tag = 'output window, operand 0, single buffered']
    %9 = vsyncpa [#allocation3], 0
    %10 = vsyncpa [#allocation6], 0
    %11 = vsyncpa [#allocation9], 0
    %12 = vsyncpa [#allocation4], 0
    // Predicated region
    $region2: #{tpu_custom_call.1} parent=1 // pred_check
      _
    $region3: #{tpu_custom_call.1} parent=1 // pred_check_branch
      %14 = sbr.rel (0) target = $region5
    $region4: #{tpu_custom_call.1} parent=1 // pred_region
      %s16 = ssub.s32 512, 512
      %17 = vsyncadd [#allocation3], %s16
      %s18 = sshll.u32 [#allocation2], 4
      %s19 = int_to_ptr.vmem [resolvable:$true] %s18
      %24 = dma.hbm_to_vmem [thread:$0]  %s0, 512, %s19, [#allocation3], 128, 128, 8
    $region5: #{tpu_custom_call.1} parent=1 // pred_fallthru
      _
    // Predicated region
    $region6: #{tpu_custom_call.1} parent=1 // pred_check
      _
    $region7: #{tpu_custom_call.1} parent=1 // pred_check_branch
      %26 = sbr.rel (0) target = $region9
    $region8: #{tpu_custom_call.1} parent=1 // pred_region
      %s28 = ssub.s32 6144, 6144
      %29 = vsyncadd [#allocation6], %s28
      %s30 = sshll.u32 [#allocation5], 4
      %s31 = int_to_ptr.vmem [resolvable:$true] %s30
      %36 = dma.hbm_to_vmem [thread:$0]  %s1, 6144, %s31, [#allocation6], 256, 256, 16
    $region9: #{tpu_custom_call.1} parent=1 // pred_fallthru
      _
    // Predicated region
    $region10: #{tpu_custom_call.1} parent=1 // pred_check
      _
    $region11: #{tpu_custom_call.1} parent=1 // pred_check_branch
      %38 = sbr.rel (0) target = $region13
    $region12: #{tpu_custom_call.1} parent=1 // pred_region
      %s40 = ssub.s32 6144, 6144
      %41 = vsyncadd [#allocation6], %s40
      %s42 = sshll.u32 [#allocation7], 4
      %s43 = int_to_ptr.vmem [resolvable:$true] %s42
      %48 = dma.hbm_to_vmem [thread:$0]  %s2, 6144, %s43, [#allocation6], 128, 128, 8
    $region13: #{tpu_custom_call.1} parent=1 // pred_fallthru
      _
    // Predicated region
    $region14: #{tpu_custom_call.1} parent=1 // pred_check
      _
    $region15: #{tpu_custom_call.1} parent=1 // pred_check_branch
      %50 = sbr.rel (0) target = $region17
    $region16: #{tpu_custom_call.1} parent=1 // pred_region
      %s52 = ssub.s32 128, 128
      %53 = vsyncadd [#allocation9], %s52
      %s55 = sshll.u32 [#allocation8], 4
      %s56 = int_to_ptr.vmem [resolvable:$true] %s55
      %58 = dma.hbm_to_vmem [thread:$0]  %s3, 128, %s56, [#allocation9]
    $region17: #{tpu_custom_call.1} parent=1 // pred_fallthru
      _
    // Predicated region
    $region18: #{tpu_custom_call.1} parent=1 // pred_check
      _
    $region19: #{tpu_custom_call.1} parent=1 // pred_check_branch
      %60 = sbr.rel (0) target = $region21
    $region20: #{tpu_custom_call.1} parent=1 // pred_region
      %61 = dma.done [#allocation3], 512
    $region21: #{tpu_custom_call.1} parent=1 // pred_fallthru
      _
    // Predicated region
    $region22: #{tpu_custom_call.1} parent=1 // pred_check
      _
    $region23: #{tpu_custom_call.1} parent=1 // pred_check_branch
      %63 = sbr.rel (0) target = $region25
    $region24: #{tpu_custom_call.1} parent=1 // pred_region
      %64 = dma.done [#allocation6], 6144
    $region25: #{tpu_custom_call.1} parent=1 // pred_fallthru
      _
    // Predicated region
    $region26: #{tpu_custom_call.1} parent=1 // pred_check
      _
    $region27: #{tpu_custom_call.1} parent=1 // pred_check_branch
      %66 = sbr.rel (0) target = $region29
    $region28: #{tpu_custom_call.1} parent=1 // pred_region
      %67 = dma.done [#allocation6], 6144
    $region29: #{tpu_custom_call.1} parent=1 // pred_fallthru
      _
    // Predicated region
    $region30: #{tpu_custom_call.1} parent=1 // pred_check
      _
    $region31: #{tpu_custom_call.1} parent=1 // pred_check_branch
      %69 = sbr.rel (0) target = $region33
    $region32: #{tpu_custom_call.1} parent=1 // pred_region
      %70 = dma.done [#allocation9], 128
    $region33: #{tpu_custom_call.1} parent=1 // pred_fallthru
      _
    %v71 = vlaneseq
    %v72 = vshrl.u32 %v71, 7
    %v73 = vadd.s32 %v72, 8
    %v74 = vadd.s32 %v72, 16
    %v75 = vadd.s32 %v72, 24
    %vm76 = vcmp.lt.s32.totalorder %v72, 0
    %v77 = vsub.s32 0, %v72
    %v78 = vsel %vm76, %v77, %v72
    %v79 = vshrl.u32 %v78, 4
    %v80 = vand.u32 %v78, 15
    %v81 = vsub.s32 0, %v80
    %v82 = vsel %vm76, %v81, %v80
    %vm83 = vcmp.lt.s32.totalorder %v73, 0
    %v84 = vsub.s32 0, %v73
    %v85 = vsel %vm83, %v84, %v73
    %v86 = vshrl.u32 %v85, 4
    %v87 = vand.u32 %v85, 15
    %v88 = vsub.s32 0, %v87
    %v89 = vsel %vm83, %v88, %v87
    %vm90 = vcmp.lt.s32.totalorder %v74, 0
    %v91 = vsub.s32 0, %v74
    %v92 = vsel %vm90, %v91, %v74
    %v93 = vshrl.u32 %v92, 4
    %v94 = vand.u32 %v92, 15
    %v95 = vsub.s32 0, %v94
    %v96 = vsel %vm90, %v95, %v94
    %vm97 = vcmp.lt.s32.totalorder %v75, 0
    %v98 = vsub.s32 0, %v75
    %v99 = vsel %vm97, %v98, %v75
    %v100 = vshrl.u32 %v99, 4
    %v101 = vand.u32 %v99, 15
    %v102 = vsub.s32 0, %v101
    %v103 = vsel %vm97, %v102, %v101
    %vm104 = vcmp.ne.s32.totalorder %v82, 0
    %vm105 = vcmp.ne.s32.totalorder %v89, 0
    %vm106 = vcmp.ne.s32.totalorder %v96, 0
    %vm107 = vcmp.ne.s32.totalorder %v103, 0
    %vm108 = vcmp.lt.s32.totalorder %v82, 0
    %vm109 = vcmp.lt.s32.totalorder %v89, 0
    %vm110 = vcmp.lt.s32.totalorder %v96, 0
    %vm111 = vcmp.lt.s32.totalorder %v103, 0
    %vm112 = vmand %vm108, %vm104
    %vm113 = vmand %vm109, %vm105
    %vm114 = vmand %vm110, %vm106
    %vm115 = vmand %vm111, %vm107
    %v116 = vadd.s32 %v82, 16
    %v117 = vadd.s32 %v89, 16
    %v118 = vadd.s32 %v96, 16
    %v119 = vadd.s32 %v103, 16
    %v120 = vsel %vm112, %v116, %v82
    %v121 = vsel %vm113, %v117, %v89
    %v122 = vsel %vm114, %v118, %v96
    %v123 = vsel %vm115, %v119, %v103
    %v124 = vld [vmem:[#allocation2] sm:$0xff]
    %v125 = vld [vmem:[#allocation2 + $0x8] sm:$0xff]
    %v126 = vld [vmem:[#allocation2 + $0x10] sm:$0xff]
    %v127 = vld [vmem:[#allocation2 + $0x18] sm:$0xff]
    %v128 = vld [vmem:[#allocation5] sm:$0xff]
    %v129 = vld [vmem:[#allocation5 + $0x8] sm:$0xff]
    %v130 = vld [vmem:[#allocation5 + $0x10] sm:$0xff]
    %v131 = vld [vmem:[#allocation5 + $0x18] sm:$0xff]
    %v132 = vld [vmem:[#allocation5 + $0x20] sm:$0xff]
    %v133 = vld [vmem:[#allocation5 + $0x28] sm:$0xff]
    %v134 = vld [vmem:[#allocation5 + $0x30] sm:$0xff]
    %v135 = vld [vmem:[#allocation5 + $0x38] sm:$0xff]
    %v136 = vld [vmem:[#allocation5 + $0x40] sm:$0xff]
    %v137 = vld [vmem:[#allocation5 + $0x48] sm:$0xff]
    %v138 = vld [vmem:[#allocation5 + $0x50] sm:$0xff]
    %v139 = vld [vmem:[#allocation5 + $0x58] sm:$0xff]
    %v140 = vld [vmem:[#allocation5 + $0x60] sm:$0xff]
    %v141 = vld [vmem:[#allocation5 + $0x68] sm:$0xff]
    %v142 = vld [vmem:[#allocation5 + $0x70] sm:$0xff]
    %v143 = vld [vmem:[#allocation5 + $0x78] sm:$0xff]
    %vm144 = vcmask 523264
    %v146 = vsel %vm144, %v124, 0
    %v149 = vsel %vm144, %v125, 0
    %v152 = vsel %vm144, %v126, 0
    %v155 = vsel %vm144, %v127, 0
    %157 = vmatprep.subr.mxu0 0.0
    %158 = vmatpush1.msra.mxu0 0.0
    %159 = vmatprep.subr.mxu0 0.0
    %160 = vmatpush1.msra.mxu0 0.0
    %161 = vmatprep.subr.mxu0 0.0
    %162 = vmatpush1.msra.mxu0 0.0
    %163 = vmatprep.subr.mxu0 0.0
    %164 = vmatpush1.msra.mxu0 0.0
    %165 = vmatprep.subr.mxu0 0.0
    %166 = vmatpush1.msra.mxu0 0.0
    %167 = vmatprep.subr.mxu0 0.0
    %168 = vmatpush1.msra.mxu0 0.0
    %169 = vmatprep.subr.mxu0 0.0
    %170 = vmatpush1.msra.mxu0 0.0
    %171 = vmatprep.subr.mxu0 0.0
    %172 = vmatpush1.msra.mxu0 0.0
    %173 = vmatprep.subr.mxu0 %v143
    %174 = vmatpush1.msra.mxu0 %v142
    %175 = vmatprep.subr.mxu0 %v141
    %176 = vmatpush1.msra.mxu0 %v140
    %177 = vmatprep.subr.mxu0 %v139
    %178 = vmatpush1.msra.mxu0 %v138
    %179 = vmatprep.subr.mxu0 %v137
    %180 = vmatpush1.msra.mxu0 %v136
    %181 = vmatprep.subr.mxu0 %v135
    %182 = vmatpush1.msra.mxu0 %v134
    %183 = vmatprep.subr.mxu0 %v133
    %184 = vmatpush1.msra.mxu0 %v132
    %185 = vmatprep.subr.mxu0 %v131
    %186 = vmatpush1.msra.mxu0 %v130
    %187 = vmatprep.subr.mxu0 %v129
    %188 = vmatpush1.msra.mxu0 %v128
    %189 = vmatprep.subr.mxu0 0.0
    %190 = vmatpush2.msra.mxu0 0.0
    %191 = vmatprep.subr.mxu0 0.0
    %192 = vmatpush2.msra.mxu0 0.0
    %193 = vmatprep.subr.mxu0 0.0
    %194 = vmatpush2.msra.mxu0 0.0
    %195 = vmatprep.subr.mxu0 0.0
    %196 = vmatpush2.msra.mxu0 0.0
    %197 = vmatprep.subr.mxu0 0.0
    %198 = vmatpush2.msra.mxu0 0.0
    %199 = vmatprep.subr.mxu0 0.0
    %200 = vmatpush2.msra.mxu0 0.0
    %201 = vmatprep.subr.mxu0 0.0
    %202 = vmatpush2.msra.mxu0 0.0
    %203 = vmatprep.subr.mxu0 0.0
    %204 = vmatpush2.msra.mxu0 0.0
    %205 = vmatprep.subr.mxu0 0.0
    %206 = vmatpush2.msra.mxu0 0.0
    %207 = vmatprep.subr.mxu0 0.0
    %208 = vmatpush2.msra.mxu0 0.0
    %209 = vmatprep.subr.mxu0 0.0
    %210 = vmatpush2.msra.mxu0 0.0
    %211 = vmatprep.subr.mxu0 0.0
    %212 = vmatpush2.msra.mxu0 0.0
    %213 = vmatprep.subr.mxu0 0.0
    %214 = vmatpush2.msra.mxu0 0.0
    %215 = vmatprep.subr.mxu0 0.0
    %216 = vmatpush2.msra.mxu0 0.0
    %217 = vmatprep.subr.mxu0 0.0
    %218 = vmatpush2.msra.mxu0 0.0
    %219 = vmatprep.subr.mxu0 0.0
    %220 = vmatpush2.msra.mxu0 0.0
    %221 = vmatprep.mubr.f32.mxu0 0.0
    %222 = vmatmul.mubr.f32.gmra.mxu0 %v146
    %v223 = vpop.f32.mrf.mxu0
    %v224 = vadd.f32 0.0, %v223
    %v225 = vpop.f32.mrf.mxu0
    %v226 = vadd.f32 0.0, %v225
    %227 = vmatprep.mubr.f32.mxu0 0.0
    %228 = vmatmul.mubr.f32.gmra.mxu0 %v149
    %v229 = vpop.f32.mrf.mxu0
    %v230 = vadd.f32 0.0, %v229
    %v231 = vpop.f32.mrf.mxu0
    %v232 = vadd.f32 0.0, %v231
    %233 = vmatprep.mubr.f32.mxu0 0.0
    %234 = vmatmul.mubr.f32.gmra.mxu0 %v152
    %v235 = vpop.f32.mrf.mxu0
    %v236 = vadd.f32 0.0, %v235
    %v237 = vpop.f32.mrf.mxu0
    %v238 = vadd.f32 0.0, %v237
    %239 = vmatprep.mubr.f32.mxu0 0.0
    %240 = vmatmul.mubr.f32.gmra.mxu0 %v155
    %v241 = vpop.f32.mrf.mxu0
    %v242 = vadd.f32 0.0, %v241
    %v243 = vpop.f32.mrf.mxu0
    %v244 = vadd.f32 0.0, %v243
    %245 = vdwg.mxu0
    %s246 = scalar_lea.vmem [#allocation5], 128
    %v247 = vld [vmem:[%s246] sm:$0xff]
    %v248 = vld [vmem:[%s246 + $0x8] sm:$0xff]
    %v249 = vld [vmem:[%s246 + $0x10] sm:$0xff]
    %v250 = vld [vmem:[%s246 + $0x18] sm:$0xff]
    %v251 = vld [vmem:[%s246 + $0x20] sm:$0xff]
    %v252 = vld [vmem:[%s246 + $0x28] sm:$0xff]
    %v253 = vld [vmem:[%s246 + $0x30] sm:$0xff]
    %v254 = vld [vmem:[%s246 + $0x38] sm:$0xff]
    %v255 = vld [vmem:[%s246 + $0x40] sm:$0xff]
    %v256 = vld [vmem:[%s246 + $0x48] sm:$0xff]
    %v257 = vld [vmem:[%s246 + $0x50] sm:$0xff]
    %v258 = vld [vmem:[%s246 + $0x58] sm:$0xff]
    %v259 = vld [vmem:[%s246 + $0x60] sm:$0xff]
    %v260 = vld [vmem:[%s246 + $0x68] sm:$0xff]
    %v261 = vld [vmem:[%s246 + $0x70] sm:$0xff]
    %v262 = vld [vmem:[%s246 + $0x78] sm:$0xff]
    %s263 = scalar_lea.vmem [#allocation5], 256
    %v264 = vld [vmem:[%s263] sm:$0xff]
    %v265 = vld [vmem:[%s263 + $0x8] sm:$0xff]
    %v266 = vld [vmem:[%s263 + $0x10] sm:$0xff]
    %v267 = vld [vmem:[%s263 + $0x18] sm:$0xff]
    %v268 = vld [vmem:[%s263 + $0x20] sm:$0xff]
    %v269 = vld [vmem:[%s263 + $0x28] sm:$0xff]
    %v270 = vld [vmem:[%s263 + $0x30] sm:$0xff]
    %v271 = vld [vmem:[%s263 + $0x38] sm:$0xff]
    %v272 = vld [vmem:[%s263 + $0x40] sm:$0xff]
    %v273 = vld [vmem:[%s263 + $0x48] sm:$0xff]
    %v274 = vld [vmem:[%s263 + $0x50] sm:$0xff]
    %v275 = vld [vmem:[%s263 + $0x58] sm:$0xff]
    %v276 = vld [vmem:[%s263 + $0x60] sm:$0xff]
    %v277 = vld [vmem:[%s263 + $0x68] sm:$0xff]
    %v278 = vld [vmem:[%s263 + $0x70] sm:$0xff]
    %v279 = vld [vmem:[%s263 + $0x78] sm:$0xff]
    %280 = vmatprep.subr.mxu0 0.0
    %281 = vmatpush1.msra.mxu0 0.0
    %282 = vmatprep.subr.mxu0 0.0
    %283 = vmatpush1.msra.mxu0 0.0
    %284 = vmatprep.subr.mxu0 0.0
    %285 = vmatpush1.msra.mxu0 0.0
    %286 = vmatprep.subr.mxu0 0.0
    %287 = vmatpush1.msra.mxu0 0.0
    %288 = vmatprep.subr.mxu0 0.0
    %289 = vmatpush1.msra.mxu0 0.0
    %290 = vmatprep.subr.mxu0 0.0
    %291 = vmatpush1.msra.mxu0 0.0
    %292 = vmatprep.subr.mxu0 0.0
    %293 = vmatpush1.msra.mxu0 0.0
    %294 = vmatprep.subr.mxu0 0.0
    %295 = vmatpush1.msra.mxu0 0.0
    %296 = vmatprep.subr.mxu0 %v279
    %297 = vmatpush1.msra.mxu0 %v278
    %298 = vmatprep.subr.mxu0 %v277
    %299 = vmatpush1.msra.mxu0 %v276
    %300 = vmatprep.subr.mxu0 %v275
    %301 = vmatpush1.msra.mxu0 %v274
    %302 = vmatprep.subr.mxu0 %v273
    %303 = vmatpush1.msra.mxu0 %v272
    %304 = vmatprep.subr.mxu0 %v271
    %305 = vmatpush1.msra.mxu0 %v270
    %306 = vmatprep.subr.mxu0 %v269
    %307 = vmatpush1.msra.mxu0 %v268
    %308 = vmatprep.subr.mxu0 %v267
    %309 = vmatpush1.msra.mxu0 %v266
    %310 = vmatprep.subr.mxu0 %v265
    %311 = vmatpush1.msra.mxu0 %v264
    %312 = vmatprep.subr.mxu0 0.0
    %313 = vmatpush2.msra.mxu0 0.0
    %314 = vmatprep.subr.mxu0 0.0
    %315 = vmatpush2.msra.mxu0 0.0
    %316 = vmatprep.subr.mxu0 0.0
    %317 = vmatpush2.msra.mxu0 0.0
    %318 = vmatprep.subr.mxu0 0.0
    %319 = vmatpush2.msra.mxu0 0.0
    %320 = vmatprep.subr.mxu0 0.0
    %321 = vmatpush2.msra.mxu0 0.0
    %322 = vmatprep.subr.mxu0 0.0
    %323 = vmatpush2.msra.mxu0 0.0
    %324 = vmatprep.subr.mxu0 0.0
    %325 = vmatpush2.msra.mxu0 0.0
    %326 = vmatprep.subr.mxu0 0.0
    %327 = vmatpush2.msra.mxu0 0.0
    %328 = vmatprep.subr.mxu0 0.0
    %329 = vmatpush2.msra.mxu0 0.0
    %330 = vmatprep.subr.mxu0 0.0
    %331 = vmatpush2.msra.mxu0 0.0
    %332 = vmatprep.subr.mxu0 0.0
    %333 = vmatpush2.msra.mxu0 0.0
    %334 = vmatprep.subr.mxu0 0.0
    %335 = vmatpush2.msra.mxu0 0.0
    %336 = vmatprep.subr.mxu0 0.0
    %337 = vmatpush2.msra.mxu0 0.0
    %338 = vmatprep.subr.mxu0 0.0
    %339 = vmatpush2.msra.mxu0 0.0
    %340 = vmatprep.subr.mxu0 0.0
    %341 = vmatpush2.msra.mxu0 0.0
    %342 = vmatprep.subr.mxu0 0.0
    %343 = vmatpush2.msra.mxu0 0.0
    %344 = vmatprep.mubr.f32.mxu0 0.0
    %345 = vmatmul.mubr.f32.gmra.mxu0 %v146
    %v346 = vpop.f32.mrf.mxu0
    %v347 = vadd.f32 0.0, %v346
    %v348 = vpop.f32.mrf.mxu0
    %v349 = vadd.f32 0.0, %v348
    %350 = vmatprep.mubr.f32.mxu0 0.0
    %351 = vmatmul.mubr.f32.gmra.mxu0 %v149
    %v352 = vpop.f32.mrf.mxu0
    %v353 = vadd.f32 0.0, %v352
    %v354 = vpop.f32.mrf.mxu0
    %v355 = vadd.f32 0.0, %v354
    %356 = vmatprep.mubr.f32.mxu0 0.0
    %357 = vmatmul.mubr.f32.gmra.mxu0 %v152
    %v358 = vpop.f32.mrf.mxu0
    %v359 = vadd.f32 0.0, %v358
    %v360 = vpop.f32.mrf.mxu0
    %v361 = vadd.f32 0.0, %v360
    %362 = vmatprep.mubr.f32.mxu0 0.0
    %363 = vmatmul.mubr.f32.gmra.mxu0 %v155
    %v364 = vpop.f32.mrf.mxu0
    %v365 = vadd.f32 0.0, %v364
    %v366 = vpop.f32.mrf.mxu0
    %v367 = vadd.f32 0.0, %v366
    %368 = vdwg.mxu0
    %vm377 = vcmask 1040384
    %v378 = vrot.slane %v224, 7
    %v379 = vrot.slane %v226, 7
    %v380 = vrot.slane %v230, 7
    %v381 = vsel %vm377, %v378, %v380
    %v382 = vrot.slane %v232, 7
    %v383 = vsel %vm377, %v379, %v382
    %v384 = vrot.slane %v236, 7
    %v385 = vsel %vm377, %v380, %v384
    %v386 = vrot.slane %v238, 7
    %v387 = vsel %vm377, %v382, %v386
    %v388 = vrot.slane %v242, 7
    %v389 = vsel %vm377, %v384, %v388
    %v390 = vrot.slane %v244, 7
    %v391 = vsel %vm377, %v386, %v390
    %v400 = vsel %vm377, 0.0, %v378
    %v401 = vsel %vm377, 0.0, %v379
    %vm402 = vcmp.gt.s32.totalorder %v120, 0
    %vm403 = vcmp.gt.s32.totalorder %v121, 0
    %vm404 = vcmp.gt.s32.totalorder %v122, 0
    %vm405 = vcmp.gt.s32.totalorder %v123, 0
    %v406 = vsel %vm402, 1, 0
    %v407 = vsel %vm403, 1, 0
    %v408 = vsel %vm404, 1, 0
    %v409 = vsel %vm405, 1, 0
    %vm410 = vcmp.eq.s32.totalorder %v406, 1
    %vm411 = vcmp.eq.s32.totalorder %v407, 1
    %vm412 = vcmp.eq.s32.totalorder %v408, 1
    %vm413 = vcmp.eq.s32.totalorder %v409, 1
    %v414 = vsel %vm410, %v400, 0.0
    %v415 = vsel %vm410, %v401, 0.0
    %v416 = vsel %vm411, %v381, 0.0
    %v417 = vsel %vm411, %v383, 0.0
    %v418 = vsel %vm412, %v385, 0.0
    %v419 = vsel %vm412, %v387, 0.0
    %v420 = vsel %vm413, %v389, 0.0
    %v421 = vsel %vm413, %v391, 0.0
    %422 = vmatprep.subr.mxu0 0.0
    %423 = vmatpush1.msra.mxu0 0.0
    %424 = vmatprep.subr.mxu0 0.0
    %425 = vmatpush1.msra.mxu0 0.0
    %426 = vmatprep.subr.mxu0 0.0
    %427 = vmatpush1.msra.mxu0 0.0
    %428 = vmatprep.subr.mxu0 0.0
    %429 = vmatpush1.msra.mxu0 0.0
    %430 = vmatprep.subr.mxu0 0.0
    %431 = vmatpush1.msra.mxu0 0.0
    %432 = vmatprep.subr.mxu0 0.0
    %433 = vmatpush1.msra.mxu0 0.0
    %434 = vmatprep.subr.mxu0 0.0
    %435 = vmatpush1.msra.mxu0 0.0
    %436 = vmatprep.subr.mxu0 0.0
    %437 = vmatpush1.msra.mxu0 0.0
    %438 = vmatprep.subr.mxu0 %v262
    %439 = vmatpush1.msra.mxu0 %v261
    %440 = vmatprep.subr.mxu0 %v260
    %441 = vmatpush1.msra.mxu0 %v259
    %442 = vmatprep.subr.mxu0 %v258
    %443 = vmatpush1.msra.mxu0 %v257
    %444 = vmatprep.subr.mxu0 %v256
    %445 = vmatpush1.msra.mxu0 %v255
    %446 = vmatprep.subr.mxu0 %v254
    %447 = vmatpush1.msra.mxu0 %v253
    %448 = vmatprep.subr.mxu0 %v252
    %449 = vmatpush1.msra.mxu0 %v251
    %450 = vmatprep.subr.mxu0 %v250
    %451 = vmatpush1.msra.mxu0 %v249
    %452 = vmatprep.subr.mxu0 %v248
    %453 = vmatpush1.msra.mxu0 %v247
    %454 = vmatprep.subr.mxu0 0.0
    %455 = vmatpush2.msra.mxu0 0.0
    %456 = vmatprep.subr.mxu0 0.0
    %457 = vmatpush2.msra.mxu0 0.0
    %458 = vmatprep.subr.mxu0 0.0
    %459 = vmatpush2.msra.mxu0 0.0
    %460 = vmatprep.subr.mxu0 0.0
    %461 = vmatpush2.msra.mxu0 0.0
    %462 = vmatprep.subr.mxu0 0.0
    %463 = vmatpush2.msra.mxu0 0.0
    %464 = vmatprep.subr.mxu0 0.0
    %465 = vmatpush2.msra.mxu0 0.0
    %466 = vmatprep.subr.mxu0 0.0
    %467 = vmatpush2.msra.mxu0 0.0
    %468 = vmatprep.subr.mxu0 0.0
    %469 = vmatpush2.msra.mxu0 0.0
    %470 = vmatprep.subr.mxu0 0.0
    %471 = vmatpush2.msra.mxu0 0.0
    %472 = vmatprep.subr.mxu0 0.0
    %473 = vmatpush2.msra.mxu0 0.0
    %474 = vmatprep.subr.mxu0 0.0
    %475 = vmatpush2.msra.mxu0 0.0
    %476 = vmatprep.subr.mxu0 0.0
    %477 = vmatpush2.msra.mxu0 0.0
    %478 = vmatprep.subr.mxu0 0.0
    %479 = vmatpush2.msra.mxu0 0.0
    %480 = vmatprep.subr.mxu0 0.0
    %481 = vmatpush2.msra.mxu0 0.0
    %482 = vmatprep.subr.mxu0 0.0
    %483 = vmatpush2.msra.mxu0 0.0
    %484 = vmatprep.subr.mxu0 0.0
    %485 = vmatpush2.msra.mxu0 0.0
    %486 = vmatprep.mubr.f32.mxu0 0.0
    %487 = vmatmul.mubr.f32.gmra.mxu0 %v146
    %v488 = vpop.f32.mrf.mxu0
    %v489 = vadd.f32 %v414, %v488
    %v490 = vpop.f32.mrf.mxu0
    %v491 = vadd.f32 %v415, %v490
    %492 = vmatprep.mubr.f32.mxu0 0.0
    %493 = vmatmul.mubr.f32.gmra.mxu0 %v149
    %v494 = vpop.f32.mrf.mxu0
    %v495 = vadd.f32 %v416, %v494
    %v496 = vpop.f32.mrf.mxu0
    %v497 = vadd.f32 %v417, %v496
    %498 = vmatprep.mubr.f32.mxu0 0.0
    %499 = vmatmul.mubr.f32.gmra.mxu0 %v152
    %v500 = vpop.f32.mrf.mxu0
    %v501 = vadd.f32 %v418, %v500
    %v502 = vpop.f32.mrf.mxu0
    %v503 = vadd.f32 %v419, %v502
    %504 = vmatprep.mubr.f32.mxu0 0.0
    %505 = vmatmul.mubr.f32.gmra.mxu0 %v155
    %v506 = vpop.f32.mrf.mxu0
    %v507 = vadd.f32 %v420, %v506
    %v508 = vpop.f32.mrf.mxu0
    %v509 = vadd.f32 %v421, %v508
    %510 = vdwg.mxu0
    %vm519 = vcmask 1046528
    %v520 = vrot.slane %v347, 1
    %v521 = vrot.slane %v353, 1
    %v522 = vsel %vm519, %v520, %v521
    %v523 = vrot.slane %v349, 1
    %v524 = vrot.slane %v355, 1
    %v525 = vsel %vm519, %v523, %v524
    %v526 = vrot.slane %v359, 1
    %v527 = vsel %vm519, %v521, %v526
    %v528 = vrot.slane %v361, 1
    %v529 = vsel %vm519, %v524, %v528
    %v530 = vrot.slane %v365, 1
    %v531 = vsel %vm519, %v526, %v530
    %v532 = vrot.slane %v367, 1
    %v533 = vsel %vm519, %v528, %v532
    %v542 = vsel %vm519, %v530, 0.0
    %v543 = vsel %vm519, %v532, 0.0
    %vm544 = vcmp.lt.s32.totalorder %v120, 15
    %vm545 = vcmp.lt.s32.totalorder %v121, 15
    %vm546 = vcmp.lt.s32.totalorder %v122, 15
    %vm547 = vcmp.lt.s32.totalorder %v123, 15
    %v548 = vsel %vm544, 1, 0
    %v549 = vsel %vm545, 1, 0
    %v550 = vsel %vm546, 1, 0
    %v551 = vsel %vm547, 1, 0
    %vm552 = vcmp.eq.s32.totalorder %v548, 1
    %vm553 = vcmp.eq.s32.totalorder %v549, 1
    %vm554 = vcmp.eq.s32.totalorder %v550, 1
    %vm555 = vcmp.eq.s32.totalorder %v551, 1
    %v556 = vsel %vm552, %v522, 0.0
    %v557 = vsel %vm552, %v525, 0.0
    %v558 = vsel %vm553, %v527, 0.0
    %v559 = vsel %vm553, %v529, 0.0
    %v560 = vsel %vm554, %v531, 0.0
    %v561 = vsel %vm554, %v533, 0.0
    %v562 = vsel %vm555, %v542, 0.0
    %v563 = vsel %vm555, %v543, 0.0
    %v564 = vadd.f32 %v489, %v556
    %v565 = vadd.f32 %v491, %v557
    %v566 = vadd.f32 %v495, %v558
    %v567 = vadd.f32 %v497, %v559
    %v568 = vadd.f32 %v501, %v560
    %v569 = vadd.f32 %v503, %v561
    %v570 = vadd.f32 %v507, %v562
    %v571 = vadd.f32 %v509, %v563
    %v572 = vld [vmem:[#allocation8] sm:$0x1]
    %v573 = vld [vmem:[#allocation8 + $0x1] sm:$0x1]
    %v574 = vadd.f32 %v564, %v566
    %v575 = vadd.f32 %v574, %v568
    %v576 = vadd.f32 %v575, %v570
    %v577 = vrot.slane %v576, 4
    %v578 = vadd.f32 %v576, %v577
    %v579 = vrot.slane %v578, 2
    %v580 = vadd.f32 %v578, %v579
    %v581 = vrot.slane %v580, 1
    %v582 = vadd.f32 %v580, %v581
    %583 = vrot.lane.b32.xlu0 %v582, 8
    %v584 = vpop.permute.xlu0 %583
    %v585 = vadd.f32 %v582, %v584
    %586 = vrot.lane.b32.xlu0 %v585, 16
    %v587 = vpop.permute.xlu0 %586
    %v588 = vadd.f32 %v585, %v587
    %589 = vrot.lane.b32.xlu0 %v588, 32
    %v590 = vpop.permute.xlu0 %589
    %v591 = vadd.f32 %v588, %v590
    %592 = vrot.lane.b32.xlu0 %v591, 64
    %v593 = vpop.permute.xlu0 %592
    %v594 = vadd.f32 %v591, %v593
    %v595 = vmul.f32 %v594, 0.001953125
    %v596 = vlaneseq
    %v597 = vshrl.u32 %v596, 7
    %v598 = vsub.s32 0, %v597
    %v599 = vrot.slane %v595, %v598
    %v600 = vsub.f32 %v564, %v599
    %v601 = vsub.f32 %v566, %v599
    %v602 = vsub.f32 %v568, %v599
    %v603 = vsub.f32 %v570, %v599
    %v604 = vmul.f32 %v600, %v600
    %v605 = vmul.f32 %v601, %v601
    %v606 = vmul.f32 %v602, %v602
    %v607 = vmul.f32 %v603, %v603
    %v608 = vadd.f32 %v604, %v605
    %v609 = vadd.f32 %v608, %v606
    %v610 = vadd.f32 %v609, %v607
    %v611 = vrot.slane %v610, 4
    %v612 = vadd.f32 %v610, %v611
    %v613 = vrot.slane %v612, 2
    %v614 = vadd.f32 %v612, %v613
    %v615 = vrot.slane %v614, 1
    %v616 = vadd.f32 %v614, %v615
    %617 = vrot.lane.b32.xlu0 %v616, 8
    %v618 = vpop.permute.xlu0 %617
    %v619 = vadd.f32 %v616, %v618
    %620 = vrot.lane.b32.xlu0 %v619, 16
    %v621 = vpop.permute.xlu0 %620
    %v622 = vadd.f32 %v619, %v621
    %623 = vrot.lane.b32.xlu0 %v622, 32
    %v624 = vpop.permute.xlu0 %623
    %v625 = vadd.f32 %v622, %v624
    %626 = vrot.lane.b32.xlu0 %v625, 64
    %v627 = vpop.permute.xlu0 %626
    %v628 = vadd.f32 %v625, %v627
    %v629 = vmul.f32 %v628, 0.001953125
    %v630 = vadd.f32 %v629, 1e-05
    %v631 = vrsqrt.pop %v630
    %v632 = vmul.f32 %v572, %v631
    %v633 = vlaneseq
    %v634 = vshrl.u32 %v633, 7
    %v635 = vsub.s32 0, %v634
    %v636 = vrot.slane %v632, %v635
    %v637 = vmul.f32 %v600, %v636
    %v638 = vmul.f32 %v601, %v636
    %v639 = vmul.f32 %v602, %v636
    %v640 = vmul.f32 %v603, %v636
    %v641 = vlaneseq
    %v642 = vshrl.u32 %v641, 7
    %v643 = vsub.s32 0, %v642
    %v644 = vrot.slane %v573, %v643
    %v645 = vadd.f32 %v637, %v644
    %v646 = vadd.f32 %v638, %v644
    %v647 = vadd.f32 %v639, %v644
    %v648 = vadd.f32 %v640, %v644
    %v649 = vmax.f32 %v645, 0.0
    %v650 = vmax.f32 %v646, 0.0
    %v651 = vmax.f32 %v647, 0.0
    %v652 = vmax.f32 %v648, 0.0
    %v653 = vld [vmem:[#allocation7] sm:$0xff]
    %v654 = vld [vmem:[#allocation7 + $0x8] sm:$0xff]
    %v655 = vld [vmem:[#allocation7 + $0x10] sm:$0xff]
    %v656 = vld [vmem:[#allocation7 + $0x18] sm:$0xff]
    %v657 = vld [vmem:[#allocation7 + $0x20] sm:$0xff]
    %v658 = vld [vmem:[#allocation7 + $0x28] sm:$0xff]
    %v659 = vld [vmem:[#allocation7 + $0x30] sm:$0xff]
    %v660 = vld [vmem:[#allocation7 + $0x38] sm:$0xff]
    %v661 = vld [vmem:[#allocation7 + $0x40] sm:$0xff]
    %v662 = vld [vmem:[#allocation7 + $0x48] sm:$0xff]
    %v663 = vld [vmem:[#allocation7 + $0x50] sm:$0xff]
    %v664 = vld [vmem:[#allocation7 + $0x58] sm:$0xff]
    %v665 = vld [vmem:[#allocation7 + $0x60] sm:$0xff]
    %v666 = vld [vmem:[#allocation7 + $0x68] sm:$0xff]
    %v667 = vld [vmem:[#allocation7 + $0x70] sm:$0xff]
    %v668 = vld [vmem:[#allocation7 + $0x78] sm:$0xff]
    %669 = vmatprep.subr.mxu0 0.0
    %670 = vmatpush1.msra.mxu0 %v668
    %671 = vmatprep.subr.mxu0 0.0
    %672 = vmatpush1.msra.mxu0 %v667
    %673 = vmatprep.subr.mxu0 0.0
    %674 = vmatpush1.msra.mxu0 %v666
    %675 = vmatprep.subr.mxu0 0.0
    %676 = vmatpush1.msra.mxu0 %v665
    %677 = vmatprep.subr.mxu0 0.0
    %678 = vmatpush1.msra.mxu0 %v664
    %679 = vmatprep.subr.mxu0 0.0
    %680 = vmatpush1.msra.mxu0 %v663
    %681 = vmatprep.subr.mxu0 0.0
    %682 = vmatpush1.msra.mxu0 %v662
    %683 = vmatprep.subr.mxu0 0.0
    %684 = vmatpush1.msra.mxu0 %v661
    %685 = vmatprep.subr.mxu0 0.0
    %686 = vmatpush1.msra.mxu0 %v660
    %687 = vmatprep.subr.mxu0 0.0
    %688 = vmatpush1.msra.mxu0 %v659
    %689 = vmatprep.subr.mxu0 0.0
    %690 = vmatpush1.msra.mxu0 %v658
    %691 = vmatprep.subr.mxu0 0.0
    %692 = vmatpush1.msra.mxu0 %v657
    %693 = vmatprep.subr.mxu0 0.0
    %694 = vmatpush1.msra.mxu0 %v656
    %695 = vmatprep.subr.mxu0 0.0
    %696 = vmatpush1.msra.mxu0 %v655
    %697 = vmatprep.subr.mxu0 0.0
    %698 = vmatpush1.msra.mxu0 %v654
    %699 = vmatprep.subr.mxu0 0.0
    %700 = vmatpush1.msra.mxu0 %v653
    %701 = vmatprep.subr.mxu0 0.0
    %702 = vmatpush2.msra.mxu0 0.0
    %703 = vmatprep.subr.mxu0 0.0
    %704 = vmatpush2.msra.mxu0 0.0
    %705 = vmatprep.subr.mxu0 0.0
    %706 = vmatpush2.msra.mxu0 0.0
    %707 = vmatprep.subr.mxu0 0.0
    %708 = vmatpush2.msra.mxu0 0.0
    %709 = vmatprep.subr.mxu0 0.0
    %710 = vmatpush2.msra.mxu0 0.0
    %711 = vmatprep.subr.mxu0 0.0
    %712 = vmatpush2.msra.mxu0 0.0
    %713 = vmatprep.subr.mxu0 0.0
    %714 = vmatpush2.msra.mxu0 0.0
    %715 = vmatprep.subr.mxu0 0.0
    %716 = vmatpush2.msra.mxu0 0.0
    %717 = vmatprep.subr.mxu0 0.0
    %718 = vmatpush2.msra.mxu0 0.0
    %719 = vmatprep.subr.mxu0 0.0
    %720 = vmatpush2.msra.mxu0 0.0
    %721 = vmatprep.subr.mxu0 0.0
    %722 = vmatpush2.msra.mxu0 0.0
    %723 = vmatprep.subr.mxu0 0.0
    %724 = vmatpush2.msra.mxu0 0.0
    %725 = vmatprep.subr.mxu0 0.0
    %726 = vmatpush2.msra.mxu0 0.0
    %727 = vmatprep.subr.mxu0 0.0
    %728 = vmatpush2.msra.mxu0 0.0
    %729 = vmatprep.subr.mxu0 0.0
    %730 = vmatpush2.msra.mxu0 0.0
    %731 = vmatprep.subr.mxu0 0.0
    %732 = vmatpush2.msra.mxu0 0.0
    %733 = vmatprep.mubr.f32.mxu0 0.0
    %734 = vmatmul.mubr.f32.gmra.mxu0 %v649
    %v735 = vpop.f32.mrf.mxu0
    %v736 = vadd.f32 0.0, %v735
    %v737 = vpop.f32.mrf.mxu0
    %738 = vmatprep.mubr.f32.mxu0 0.0
    %739 = vmatmul.mubr.f32.gmra.mxu0 %v650
    %v740 = vpop.f32.mrf.mxu0
    %v741 = vadd.f32 0.0, %v740
    %v742 = vpop.f32.mrf.mxu0
    %743 = vmatprep.mubr.f32.mxu0 0.0
    %744 = vmatmul.mubr.f32.gmra.mxu0 %v651
    %v745 = vpop.f32.mrf.mxu0
    %v746 = vadd.f32 0.0, %v745
    %v747 = vpop.f32.mrf.mxu0
    %748 = vmatprep.mubr.f32.mxu0 0.0
    %749 = vmatmul.mubr.f32.gmra.mxu0 %v652
    %v750 = vpop.f32.mrf.mxu0
    %v751 = vadd.f32 0.0, %v750
    %v752 = vpop.f32.mrf.mxu0
    %753 = vdwg.mxu0
    %s754 = scalar_lea.vmem [#allocation7], 128
    %v755 = vld [vmem:[%s754] sm:$0xff]
    %v756 = vld [vmem:[%s754 + $0x8] sm:$0xff]
    %v757 = vld [vmem:[%s754 + $0x10] sm:$0xff]
    %v758 = vld [vmem:[%s754 + $0x18] sm:$0xff]
    %v759 = vld [vmem:[%s754 + $0x20] sm:$0xff]
    %v760 = vld [vmem:[%s754 + $0x28] sm:$0xff]
    %v761 = vld [vmem:[%s754 + $0x30] sm:$0xff]
    %v762 = vld [vmem:[%s754 + $0x38] sm:$0xff]
    %v763 = vld [vmem:[%s754 + $0x40] sm:$0xff]
    %v764 = vld [vmem:[%s754 + $0x48] sm:$0xff]
    %v765 = vld [vmem:[%s754 + $0x50] sm:$0xff]
    %v766 = vld [vmem:[%s754 + $0x58] sm:$0xff]
    %v767 = vld [vmem:[%s754 + $0x60] sm:$0xff]
    %v768 = vld [vmem:[%s754 + $0x68] sm:$0xff]
    %v769 = vld [vmem:[%s754 + $0x70] sm:$0xff]
    %v770 = vld [vmem:[%s754 + $0x78] sm:$0xff]
    %s771 = scalar_lea.vmem [#allocation7], 256
    %v772 = vld [vmem:[%s771] sm:$0xff]
    %v773 = vld [vmem:[%s771 + $0x8] sm:$0xff]
    %v774 = vld [vmem:[%s771 + $0x10] sm:$0xff]
    %v775 = vld [vmem:[%s771 + $0x18] sm:$0xff]
    %v776 = vld [vmem:[%s771 + $0x20] sm:$0xff]
    %v777 = vld [vmem:[%s771 + $0x28] sm:$0xff]
    %v778 = vld [vmem:[%s771 + $0x30] sm:$0xff]
    %v779 = vld [vmem:[%s771 + $0x38] sm:$0xff]
    %v780 = vld [vmem:[%s771 + $0x40] sm:$0xff]
    %v781 = vld [vmem:[%s771 + $0x48] sm:$0xff]
    %v782 = vld [vmem:[%s771 + $0x50] sm:$0xff]
    %v783 = vld [vmem:[%s771 + $0x58] sm:$0xff]
    %v784 = vld [vmem:[%s771 + $0x60] sm:$0xff]
    %v785 = vld [vmem:[%s771 + $0x68] sm:$0xff]
    %v786 = vld [vmem:[%s771 + $0x70] sm:$0xff]
    %v787 = vld [vmem:[%s771 + $0x78] sm:$0xff]
    %788 = vmatprep.subr.mxu0 0.0
    %789 = vmatpush1.msra.mxu0 %v787
    %790 = vmatprep.subr.mxu0 0.0
    %791 = vmatpush1.msra.mxu0 %v786
    %792 = vmatprep.subr.mxu0 0.0
    %793 = vmatpush1.msra.mxu0 %v785
    %794 = vmatprep.subr.mxu0 0.0
    %795 = vmatpush1.msra.mxu0 %v784
    %796 = vmatprep.subr.mxu0 0.0
    %797 = vmatpush1.msra.mxu0 %v783
    %798 = vmatprep.subr.mxu0 0.0
    %799 = vmatpush1.msra.mxu0 %v782
    %800 = vmatprep.subr.mxu0 0.0
    %801 = vmatpush1.msra.mxu0 %v781
    %802 = vmatprep.subr.mxu0 0.0
    %803 = vmatpush1.msra.mxu0 %v780
    %804 = vmatprep.subr.mxu0 0.0
    %805 = vmatpush1.msra.mxu0 %v779
    %806 = vmatprep.subr.mxu0 0.0
    %807 = vmatpush1.msra.mxu0 %v778
    %808 = vmatprep.subr.mxu0 0.0
    %809 = vmatpush1.msra.mxu0 %v777
    %810 = vmatprep.subr.mxu0 0.0
    %811 = vmatpush1.msra.mxu0 %v776
    %812 = vmatprep.subr.mxu0 0.0
    %813 = vmatpush1.msra.mxu0 %v775
    %814 = vmatprep.subr.mxu0 0.0
    %815 = vmatpush1.msra.mxu0 %v774
    %816 = vmatprep.subr.mxu0 0.0
    %817 = vmatpush1.msra.mxu0 %v773
    %818 = vmatprep.subr.mxu0 0.0
    %819 = vmatpush1.msra.mxu0 %v772
    %820 = vmatprep.subr.mxu0 0.0
    %821 = vmatpush2.msra.mxu0 0.0
    %822 = vmatprep.subr.mxu0 0.0
    %823 = vmatpush2.msra.mxu0 0.0
    %824 = vmatprep.subr.mxu0 0.0
    %825 = vmatpush2.msra.mxu0 0.0
    %826 = vmatprep.subr.mxu0 0.0
    %827 = vmatpush2.msra.mxu0 0.0
    %828 = vmatprep.subr.mxu0 0.0
    %829 = vmatpush2.msra.mxu0 0.0
    %830 = vmatprep.subr.mxu0 0.0
    %831 = vmatpush2.msra.mxu0 0.0
    %832 = vmatprep.subr.mxu0 0.0
    %833 = vmatpush2.msra.mxu0 0.0
    %834 = vmatprep.subr.mxu0 0.0
    %835 = vmatpush2.msra.mxu0 0.0
    %836 = vmatprep.subr.mxu0 0.0
    %837 = vmatpush2.msra.mxu0 0.0
    %838 = vmatprep.subr.mxu0 0.0
    %839 = vmatpush2.msra.mxu0 0.0
    %840 = vmatprep.subr.mxu0 0.0
    %841 = vmatpush2.msra.mxu0 0.0
    %842 = vmatprep.subr.mxu0 0.0
    %843 = vmatpush2.msra.mxu0 0.0
    %844 = vmatprep.subr.mxu0 0.0
    %845 = vmatpush2.msra.mxu0 0.0
    %846 = vmatprep.subr.mxu0 0.0
    %847 = vmatpush2.msra.mxu0 0.0
    %848 = vmatprep.subr.mxu0 0.0
    %849 = vmatpush2.msra.mxu0 0.0
    %850 = vmatprep.subr.mxu0 0.0
    %851 = vmatpush2.msra.mxu0 0.0
    %852 = vmatprep.mubr.f32.mxu0 0.0
    %853 = vmatmul.mubr.f32.gmra.mxu0 %v649
    %v854 = vpop.f32.mrf.mxu0
    %v855 = vadd.f32 0.0, %v854
    %v856 = vpop.f32.mrf.mxu0
    %857 = vmatprep.mubr.f32.mxu0 0.0
    %858 = vmatmul.mubr.f32.gmra.mxu0 %v650
    %v859 = vpop.f32.mrf.mxu0
    %v860 = vadd.f32 0.0, %v859
    %v861 = vpop.f32.mrf.mxu0
    %862 = vmatprep.mubr.f32.mxu0 0.0
    %863 = vmatmul.mubr.f32.gmra.mxu0 %v651
    %v864 = vpop.f32.mrf.mxu0
    %v865 = vadd.f32 0.0, %v864
    %v866 = vpop.f32.mrf.mxu0
    %867 = vmatprep.mubr.f32.mxu0 0.0
    %868 = vmatmul.mubr.f32.gmra.mxu0 %v652
    %v869 = vpop.f32.mrf.mxu0
    %v870 = vadd.f32 0.0, %v869
    %v871 = vpop.f32.mrf.mxu0
    %872 = vdwg.mxu0
    %v877 = vrot.slane %v736, 7
    %v878 = vrot.slane %v741, 7
    %v879 = vsel %vm377, %v877, %v878
    %v880 = vrot.slane %v746, 7
    %v881 = vsel %vm377, %v878, %v880
    %v882 = vrot.slane %v751, 7
    %v883 = vsel %vm377, %v880, %v882
    %v888 = vsel %vm377, 0.0, %v877
    %v889 = vsel %vm410, %v888, 0.0
    %v890 = vsel %vm411, %v879, 0.0
    %v891 = vsel %vm412, %v881, 0.0
    %v892 = vsel %vm413, %v883, 0.0
    %893 = vmatprep.subr.mxu0 0.0
    %894 = vmatpush1.msra.mxu0 %v770
    %895 = vmatprep.subr.mxu0 0.0
    %896 = vmatpush1.msra.mxu0 %v769
    %897 = vmatprep.subr.mxu0 0.0
    %898 = vmatpush1.msra.mxu0 %v768
    %899 = vmatprep.subr.mxu0 0.0
    %900 = vmatpush1.msra.mxu0 %v767
    %901 = vmatprep.subr.mxu0 0.0
    %902 = vmatpush1.msra.mxu0 %v766
    %903 = vmatprep.subr.mxu0 0.0
    %904 = vmatpush1.msra.mxu0 %v765
    %905 = vmatprep.subr.mxu0 0.0
    %906 = vmatpush1.msra.mxu0 %v764
    %907 = vmatprep.subr.mxu0 0.0
    %908 = vmatpush1.msra.mxu0 %v763
    %909 = vmatprep.subr.mxu0 0.0
    %910 = vmatpush1.msra.mxu0 %v762
    %911 = vmatprep.subr.mxu0 0.0
    %912 = vmatpush1.msra.mxu0 %v761
    %913 = vmatprep.subr.mxu0 0.0
    %914 = vmatpush1.msra.mxu0 %v760
    %915 = vmatprep.subr.mxu0 0.0
    %916 = vmatpush1.msra.mxu0 %v759
    %917 = vmatprep.subr.mxu0 0.0
    %918 = vmatpush1.msra.mxu0 %v758
    %919 = vmatprep.subr.mxu0 0.0
    %920 = vmatpush1.msra.mxu0 %v757
    %921 = vmatprep.subr.mxu0 0.0
    %922 = vmatpush1.msra.mxu0 %v756
    %923 = vmatprep.subr.mxu0 0.0
    %924 = vmatpush1.msra.mxu0 %v755
    %925 = vmatprep.subr.mxu0 0.0
    %926 = vmatpush2.msra.mxu0 0.0
    %927 = vmatprep.subr.mxu0 0.0
    %928 = vmatpush2.msra.mxu0 0.0
    %929 = vmatprep.subr.mxu0 0.0
    %930 = vmatpush2.msra.mxu0 0.0
    %931 = vmatprep.subr.mxu0 0.0
    %932 = vmatpush2.msra.mxu0 0.0
    %933 = vmatprep.subr.mxu0 0.0
    %934 = vmatpush2.msra.mxu0 0.0
    %935 = vmatprep.subr.mxu0 0.0
    %936 = vmatpush2.msra.mxu0 0.0
    %937 = vmatprep.subr.mxu0 0.0
    %938 = vmatpush2.msra.mxu0 0.0
    %939 = vmatprep.subr.mxu0 0.0
    %940 = vmatpush2.msra.mxu0 0.0
    %941 = vmatprep.subr.mxu0 0.0
    %942 = vmatpush2.msra.mxu0 0.0
    %943 = vmatprep.subr.mxu0 0.0
    %944 = vmatpush2.msra.mxu0 0.0
    %945 = vmatprep.subr.mxu0 0.0
    %946 = vmatpush2.msra.mxu0 0.0
    %947 = vmatprep.subr.mxu0 0.0
    %948 = vmatpush2.msra.mxu0 0.0
    %949 = vmatprep.subr.mxu0 0.0
    %950 = vmatpush2.msra.mxu0 0.0
    %951 = vmatprep.subr.mxu0 0.0
    %952 = vmatpush2.msra.mxu0 0.0
    %953 = vmatprep.subr.mxu0 0.0
    %954 = vmatpush2.msra.mxu0 0.0
    %955 = vmatprep.subr.mxu0 0.0
    %956 = vmatpush2.msra.mxu0 0.0
    %957 = vmatprep.mubr.f32.mxu0 0.0
    %958 = vmatmul.mubr.f32.gmra.mxu0 %v649
    %v959 = vpop.f32.mrf.mxu0
    %v960 = vadd.f32 %v889, %v959
    %v961 = vpop.f32.mrf.mxu0
    %962 = vmatprep.mubr.f32.mxu0 0.0
    %963 = vmatmul.mubr.f32.gmra.mxu0 %v650
    %v964 = vpop.f32.mrf.mxu0
    %v965 = vadd.f32 %v890, %v964
    %v966 = vpop.f32.mrf.mxu0
    %967 = vmatprep.mubr.f32.mxu0 0.0
    %968 = vmatmul.mubr.f32.gmra.mxu0 %v651
    %v969 = vpop.f32.mrf.mxu0
    %v970 = vadd.f32 %v891, %v969
    %v971 = vpop.f32.mrf.mxu0
    %972 = vmatprep.mubr.f32.mxu0 0.0
    %973 = vmatmul.mubr.f32.gmra.mxu0 %v652
    %v974 = vpop.f32.mrf.mxu0
    %v975 = vadd.f32 %v892, %v974
    %v976 = vpop.f32.mrf.mxu0
    %977 = vdwg.mxu0
    %v982 = vrot.slane %v855, 1
    %v983 = vrot.slane %v860, 1
    %v984 = vsel %vm519, %v982, %v983
    %v985 = vrot.slane %v865, 1
    %v986 = vsel %vm519, %v983, %v985
    %v987 = vrot.slane %v870, 1
    %v988 = vsel %vm519, %v985, %v987
    %v993 = vsel %vm519, %v987, 0.0
    %v994 = vsel %vm552, %v984, 0.0
    %v995 = vsel %vm553, %v986, 0.0
    %v996 = vsel %vm554, %v988, 0.0
    %v997 = vsel %vm555, %v993, 0.0
    %v998 = vadd.f32 %v960, %v994
    %v999 = vadd.f32 %v965, %v995
    %v1000 = vadd.f32 %v970, %v996
    %v1001 = vadd.f32 %v975, %v997
    %v1002 = vld [vmem:[#allocation8 + $0x2] sm:$0x1]
    %v1003 = vld [vmem:[#allocation8 + $0x3] sm:$0x1]
    %v1004 = vadd.f32 %v998, %v999
    %v1005 = vadd.f32 %v1004, %v1000
    %v1006 = vadd.f32 %v1005, %v1001
    %v1007 = vrot.slane %v1006, 4
    %v1008 = vadd.f32 %v1006, %v1007
    %v1009 = vrot.slane %v1008, 2
    %v1010 = vadd.f32 %v1008, %v1009
    %v1011 = vrot.slane %v1010, 1
    %v1012 = vadd.f32 %v1010, %v1011
    %1013 = vrot.lane.b32.xlu0 %v1012, 8
    %v1014 = vpop.permute.xlu0 %1013
    %v1015 = vadd.f32 %v1012, %v1014
    %1016 = vrot.lane.b32.xlu0 %v1015, 16
    %v1017 = vpop.permute.xlu0 %1016
    %v1018 = vadd.f32 %v1015, %v1017
    %1019 = vrot.lane.b32.xlu0 %v1018, 32
    %v1020 = vpop.permute.xlu0 %1019
    %v1021 = vadd.f32 %v1018, %v1020
    %1022 = vrot.lane.b32.xlu0 %v1021, 64
    %v1023 = vpop.permute.xlu0 %1022
    %v1024 = vadd.f32 %v1021, %v1023
    %v1025 = vmul.f32 %v1024, 0.001953125
    %v1026 = vlaneseq
    %v1027 = vshrl.u32 %v1026, 7
    %v1028 = vsub.s32 0, %v1027
    %v1029 = vrot.slane %v1025, %v1028
    %v1030 = vsub.f32 %v998, %v1029
    %v1031 = vsub.f32 %v999, %v1029
    %v1032 = vsub.f32 %v1000, %v1029
    %v1033 = vsub.f32 %v1001, %v1029
    %v1034 = vmul.f32 %v1030, %v1030
    %v1035 = vmul.f32 %v1031, %v1031
    %v1036 = vmul.f32 %v1032, %v1032
    %v1037 = vmul.f32 %v1033, %v1033
    %v1038 = vadd.f32 %v1034, %v1035
    %v1039 = vadd.f32 %v1038, %v1036
    %v1040 = vadd.f32 %v1039, %v1037
    %v1041 = vrot.slane %v1040, 4
    %v1042 = vadd.f32 %v1040, %v1041
    %v1043 = vrot.slane %v1042, 2
    %v1044 = vadd.f32 %v1042, %v1043
    %v1045 = vrot.slane %v1044, 1
    %v1046 = vadd.f32 %v1044, %v1045
    %1047 = vrot.lane.b32.xlu0 %v1046, 8
    %v1048 = vpop.permute.xlu0 %1047
    %v1049 = vadd.f32 %v1046, %v1048
    %1050 = vrot.lane.b32.xlu0 %v1049, 16
    %v1051 = vpop.permute.xlu0 %1050
    %v1052 = vadd.f32 %v1049, %v1051
    %1053 = vrot.lane.b32.xlu0 %v1052, 32
    %v1054 = vpop.permute.xlu0 %1053
    %v1055 = vadd.f32 %v1052, %v1054
    %1056 = vrot.lane.b32.xlu0 %v1055, 64
    %v1057 = vpop.permute.xlu0 %1056
    %v1058 = vadd.f32 %v1055, %v1057
    %v1059 = vmul.f32 %v1058, 0.001953125
    %v1060 = vadd.f32 %v1059, 1e-05
    %v1061 = vrsqrt.pop %v1060
    %v1062 = vmul.f32 %v1002, %v1061
    %v1063 = vlaneseq
    %v1064 = vshrl.u32 %v1063, 7
    %v1065 = vsub.s32 0, %v1064
    %v1066 = vrot.slane %v1062, %v1065
    %v1067 = vmul.f32 %v1030, %v1066
    %v1068 = vmul.f32 %v1031, %v1066
    %v1069 = vmul.f32 %v1032, %v1066
    %v1070 = vmul.f32 %v1033, %v1066
    %v1071 = vlaneseq
    %v1072 = vshrl.u32 %v1071, 7
    %v1073 = vsub.s32 0, %v1072
    %v1074 = vrot.slane %v1003, %v1073
    %v1075 = vadd.f32 %v1067, %v1074
    %v1076 = vadd.f32 %v1068, %v1074
    %v1077 = vadd.f32 %v1069, %v1074
    %v1078 = vadd.f32 %v1070, %v1074
    %v1079 = vld [vmem:[#allocation8 + $0x4] sm:$0x1]
    %v1080 = vld [vmem:[#allocation8 + $0x5] sm:$0x1]
    %v1081 = vadd.f32 %v565, %v567
    %v1082 = vadd.f32 %v1081, %v569
    %v1083 = vadd.f32 %v1082, %v571
    %v1084 = vrot.slane %v1083, 4
    %v1085 = vadd.f32 %v1083, %v1084
    %v1086 = vrot.slane %v1085, 2
    %v1087 = vadd.f32 %v1085, %v1086
    %v1088 = vrot.slane %v1087, 1
    %v1089 = vadd.f32 %v1087, %v1088
    %1090 = vrot.lane.b32.xlu0 %v1089, 8
    %v1091 = vpop.permute.xlu0 %1090
    %v1092 = vadd.f32 %v1089, %v1091
    %1093 = vrot.lane.b32.xlu0 %v1092, 16
    %v1094 = vpop.permute.xlu0 %1093
    %v1095 = vadd.f32 %v1092, %v1094
    %1096 = vrot.lane.b32.xlu0 %v1095, 32
    %v1097 = vpop.permute.xlu0 %1096
    %v1098 = vadd.f32 %v1095, %v1097
    %1099 = vrot.lane.b32.xlu0 %v1098, 64
    %v1100 = vpop.permute.xlu0 %1099
    %v1101 = vadd.f32 %v1098, %v1100
    %v1102 = vmul.f32 %v1101, 0.001953125
    %v1103 = vlaneseq
    %v1104 = vshrl.u32 %v1103, 7
    %v1105 = vsub.s32 0, %v1104
    %v1106 = vrot.slane %v1102, %v1105
    %v1107 = vsub.f32 %v565, %v1106
    %v1108 = vsub.f32 %v567, %v1106
    %v1109 = vsub.f32 %v569, %v1106
    %v1110 = vsub.f32 %v571, %v1106
    %v1111 = vmul.f32 %v1107, %v1107
    %v1112 = vmul.f32 %v1108, %v1108
    %v1113 = vmul.f32 %v1109, %v1109
    %v1114 = vmul.f32 %v1110, %v1110
    %v1115 = vadd.f32 %v1111, %v1112
    %v1116 = vadd.f32 %v1115, %v1113
    %v1117 = vadd.f32 %v1116, %v1114
    %v1118 = vrot.slane %v1117, 4
    %v1119 = vadd.f32 %v1117, %v1118
    %v1120 = vrot.slane %v1119, 2
    %v1121 = vadd.f32 %v1119, %v1120
    %v1122 = vrot.slane %v1121, 1
    %v1123 = vadd.f32 %v1121, %v1122
    %1124 = vrot.lane.b32.xlu0 %v1123, 8
    %v1125 = vpop.permute.xlu0 %1124
    %v1126 = vadd.f32 %v1123, %v1125
    %1127 = vrot.lane.b32.xlu0 %v1126, 16
    %v1128 = vpop.permute.xlu0 %1127
    %v1129 = vadd.f32 %v1126, %v1128
    %1130 = vrot.lane.b32.xlu0 %v1129, 32
    %v1131 = vpop.permute.xlu0 %1130
    %v1132 = vadd.f32 %v1129, %v1131
    %1133 = vrot.lane.b32.xlu0 %v1132, 64
    %v1134 = vpop.permute.xlu0 %1133
    %v1135 = vadd.f32 %v1132, %v1134
    %v1136 = vmul.f32 %v1135, 0.001953125
    %v1137 = vadd.f32 %v1136, 1e-05
    %v1138 = vrsqrt.pop %v1137
    %v1139 = vmul.f32 %v1079, %v1138
    %v1140 = vlaneseq
    %v1141 = vshrl.u32 %v1140, 7
    %v1142 = vsub.s32 0, %v1141
    %v1143 = vrot.slane %v1139, %v1142
    %v1144 = vmul.f32 %v1107, %v1143
    %v1145 = vmul.f32 %v1108, %v1143
    %v1146 = vmul.f32 %v1109, %v1143
    %v1147 = vmul.f32 %v1110, %v1143
    %v1148 = vlaneseq
    %v1149 = vshrl.u32 %v1148, 7
    %v1150 = vsub.s32 0, %v1149
    %v1151 = vrot.slane %v1080, %v1150
    %v1152 = vadd.f32 %v1144, %v1151
    %v1153 = vadd.f32 %v1145, %v1151
    %v1154 = vadd.f32 %v1146, %v1151
    %v1155 = vadd.f32 %v1147, %v1151
    %v1156 = vadd.f32 %v1075, %v1152
    %v1157 = vadd.f32 %v1076, %v1153
    %v1158 = vadd.f32 %v1077, %v1154
    %v1159 = vadd.f32 %v1078, %v1155
    %v1160 = vmax.f32 %v1156, 0.0
    %v1161 = vmax.f32 %v1157, 0.0
    %v1162 = vmax.f32 %v1158, 0.0
    %v1163 = vmax.f32 %v1159, 0.0
    %1164 = vst [vmem:[#allocation10] sm:$0xff] %v1160
    %1165 = vst [vmem:[#allocation10 + $0x8] sm:$0xff] %v1161
    %1166 = vst [vmem:[#allocation10 + $0x10] sm:$0xff] %v1162
    %1167 = vst [vmem:[#allocation10 + $0x18] sm:$0xff] %v1163
    // Predicated region
    $region34: #{tpu_custom_call.1} parent=1 // pred_check
      _
    $region35: #{tpu_custom_call.1} parent=1 // pred_check_branch
      %1169 = sbr.rel (0) target = $region37
    $region36: #{tpu_custom_call.1} parent=1 // pred_region
      %s1171 = ssub.s32 512, 512
      %1172 = vsyncadd [#allocation4], %s1171
      %s1173 = sshll.u32 [#allocation10], 4
      %s1174 = int_to_ptr.vmem [resolvable:$true] %s1173
      %1179 = dma.vmem_to_hbm [thread:$0]  %s1174, 512, %s4, [#allocation4], 128, 128, 8
    $region37: #{tpu_custom_call.1} parent=1 // pred_fallthru
      _
    // Predicated region
    $region38: #{tpu_custom_call.1} parent=1 // pred_check
      _
    $region39: #{tpu_custom_call.1} parent=1 // pred_check_branch
      %1181 = sbr.rel (0) target = $region41
    $region40: #{tpu_custom_call.1} parent=1 // pred_region
      %1182 = dma.done [#allocation4], 512
    $region41: #{tpu_custom_call.1} parent=1 // pred_fallthru
      _
    %1183 = vsyncpa [#allocation3], 1
    %1184 = vsyncpa [#allocation6], 1
    %1185 = vsyncpa [#allocation9], 1
    %1186 = vsyncpa [#allocation4], 1

</llo_original>
